<compile_context>
chip_gen: v6e
topology: v6e:2x2x1
jax: 0.10.0
libtpu: 0.0.40
codegen_flags: <defaults>
</compile_context>

<pallas_src>
import math
import functools

import jax
import jax.numpy as jnp
from jax.experimental import pallas as pl
from jax.experimental.pallas import tpu as pltpu


# ----------------------------- Pallas kernel --------------------------------

def mha_kernel(valid_ref,            # SMEM (B,) int32  -- scalar prefetch
               q_ref, k_ref, v_ref,  # VMEM (B*Lq, D), (B*Lk, D), (B*Lk, D)
               wqkv_ref,             # VMEM (3, D, H)  packed [Wq*scale, Wk, Wv]
               wo_ref,               # VMEM (H, H)
               out_ref,              # VMEM (B*Lq, H)
               *, num_heads, head_dim, batch):
    H = num_heads * head_dim
    Lq = q_ref.shape[0] // batch
    Lk = k_ref.shape[0] // batch

    q = q_ref[...]                   # (B*Lq, D)
    k = k_ref[...]                   # (B*Lk, D)
    v = v_ref[...]                   # (B*Lk, D)
    Wq = wqkv_ref[0]                 # (D, H)  (1/sqrt(dh) already folded in)
    Wk = wqkv_ref[1]                 # (D, H)
    Wv = wqkv_ref[2]                 # (D, H)
    Wo = wo_ref[...]                 # (H, H)

    # Full-width projections for ALL batches at once: 3 fat MXU matmuls
    # instead of 3 * B (or 3 * B * heads) skinny ones.
    Q = jnp.dot(q, Wq, preferred_element_type=jnp.float32)   # (B*Lq, H)
    K = jnp.dot(k, Wk, preferred_element_type=jnp.float32)   # (B*Lk, H)
    V = jnp.dot(v, Wv, preferred_element_type=jnp.float32)   # (B*Lk, H)

    # Key-position mask columns (shared by all batches / heads).
    col = jax.lax.broadcasted_iota(jnp.int32, (Lq, Lk), 1)

    # Static (fully unrolled) loops over batch and heads: all slices are static
    # sublane/lane slices, everything stays in registers until the final store.
    rows = []
    for b in range(batch):
        valid = valid_ref[b]
        # Additive mask, built once per batch: 0 where key < valid, else -1e6
        # (d2l masked_softmax semantics).
        bias = jnp.where(col < valid, jnp.float32(0.0), jnp.float32(-1e6))

        Qb = Q[b * Lq:(b + 1) * Lq, :]                        # (Lq, H)
        Kb = K[b * Lk:(b + 1) * Lk, :]                        # (Lk, H)
        Vb = V[b * Lk:(b + 1) * Lk, :]                        # (Lk, H)

        heads = []
        for h in range(num_heads):
            s = h * head_dim
            Qh = Qb[:, s:s + head_dim]                        # (Lq, dh)
            Kh = Kb[:, s:s + head_dim]                        # (Lk, dh)
            Vh = Vb[:, s:s + head_dim]                        # (Lk, dh)

            # Contract last dims directly (no materialized K transpose).
            scores = jax.lax.dot_general(
                Qh, Kh, (((1,), (1,)), ((), ())),
                preferred_element_type=jnp.float32) + bias    # (Lq, Lk)

            # Softmax over keys, exact division (f32).
            scores = scores - jnp.max(scores, axis=-1, keepdims=True)
            e = jnp.exp(scores)
            attn = e / jnp.sum(e, axis=-1, keepdims=True)

            # TODO(synk): dropout inside DotProductAttention omitted (p=0 / eval mode).

            heads.append(jnp.dot(attn, Vh,
                                 preferred_element_type=jnp.float32))  # (Lq, dh)

        rows.append(jnp.concatenate(heads, axis=-1))          # (Lq, H)

    # concat(heads) over all batches, then ONE output projection matmul.
    O = jnp.concatenate(rows, axis=0)                         # (B*Lq, H)
    out_ref[...] = jnp.dot(O, Wo,
                           preferred_element_type=jnp.float32).astype(out_ref.dtype)


# ------------------------------- wrapper -------------------------------------

def multi_head_attention(queries, keys, values, valid_lens,
                         Wq, Wk, Wv, Wo, num_heads):
    """queries (B,Lq,Dq), keys/values (B,Lk,Dk/Dv), valid_lens (B,) int32.
    Wq/Wk/Wv: (D_in, H), Wo: (H, H)  [already transposed vs torch Linear.weight].
    Returns (B, Lq, H)."""
    B, Lq, Dq = queries.shape
    _, Lk, Dk = keys.shape
    _, _, Dv = values.shape
    H = Wq.shape[1]
    assert H % num_heads == 0
    dh = H // num_heads
    assert Dq == Dk == Dv, "packed QKV weight assumes equal input widths"

    # Fold the 1/sqrt(dh) attention scale into W_q; pack the three projection
    # weights into one (3, D, H) tile (single resident weight DMA).
    Wqkv = jnp.stack([Wq / math.sqrt(dh), Wk, Wv], axis=0).astype(jnp.float32)

    # Fold batch into the sublane axis (free reshapes in the wrapper) so the
    # kernel's projections / output matmul are batched across B.
    q2 = queries.reshape(B * Lq, Dq).astype(jnp.float32)
    k2 = keys.reshape(B * Lk, Dk).astype(jnp.float32)
    v2 = values.reshape(B * Lk, Dv).astype(jnp.float32)

    kernel = functools.partial(mha_kernel, num_heads=num_heads,
                               head_dim=dh, batch=B)

    out2 = pl.pallas_call(
        kernel,
        out_shape=jax.ShapeDtypeStruct((B * Lq, H), jnp.float32),
        grid_spec=pltpu.PrefetchScalarGridSpec(
            num_scalar_prefetch=1,          # valid_lens -> SMEM
            grid=(1,),                      # single step: no per-step overhead
            in_specs=[
                pl.BlockSpec((B * Lq, Dq), lambda i, *_: (0, 0)),     # queries
                pl.BlockSpec((B * Lk, Dk), lambda i, *_: (0, 0)),     # keys
                pl.BlockSpec((B * Lk, Dv), lambda i, *_: (0, 0)),     # values
                pl.BlockSpec((3, Dq, H),   lambda i, *_: (0, 0, 0)),  # packed Wqkv
                pl.BlockSpec((H, H),       lambda i, *_: (0, 0)),     # Wo
            ],
            out_specs=pl.BlockSpec((B * Lq, H), lambda i, *_: (0, 0)),
        ),
        compiler_params=pltpu.CompilerParams(
            dimension_semantics=("arbitrary",),
        ),
    )(valid_lens.astype(jnp.int32), q2, k2, v2, Wqkv, Wo.astype(jnp.float32))

    return out2.reshape(B, Lq, H)


# --------------------------- pure-JAX reference -------------------------------

def ref_mha(queries, keys, values, valid_lens, Wq, Wk, Wv, Wo, num_heads):
    """Accurate (Precision.HIGHEST) f32 reference mirroring the torch module."""
    B, Lq, _ = queries.shape
    _, Lk, _ = keys.shape
    H = Wq.shape[1]
    dh = H // num_heads
    hp = jax.lax.Precision.HIGHEST

    def split(x):  # transpose_qkv
        B_, L, _ = x.shape
        x = x.reshape(B_, L, num_heads, dh).transpose(0, 2, 1, 3)
        return x.reshape(B_ * num_heads, L, dh)

    q = split(jnp.einsum("bld,dh->blh", queries, Wq, precision=hp))
    k = split(jnp.einsum("bld,dh->blh", keys, Wk, precision=hp))
    v = split(jnp.einsum("bld,dh->blh", values, Wv, precision=hp))

    scores = jnp.einsum("bqd,bkd->bqk", q, k, precision=hp) / math.sqrt(dh)
    vl = jnp.repeat(valid_lens, num_heads, axis=0)                    # (B*nh,)
    col = jnp.arange(Lk)[None, None, :]
    mask = col < vl[:, None, None]
    scores = jnp.where(mask, scores, -1e6)
    attn = jax.nn.softmax(scores, axis=-1)
    o = jnp.einsum("bqk,bkd->bqd", attn, v, precision=hp)             # (B*nh, Lq, dh)

    # transpose_output
    o = o.reshape(B, num_heads, Lq, dh).transpose(0, 2, 1, 3).reshape(B, Lq, H)
    return jnp.einsum("blh,ho->blo", o, Wo, precision=hp)


# --------------------------------- main ---------------------------------------

if __name__ == "__main__":
    # Shapes implied by the module: seq=8, hidden=32, heads=4, batch=2.
    B, L, H, num_heads = 2, 8, 32, 4
    key_size = query_size = value_size = H

    key = jax.random.PRNGKey(0)
    k_pe, k_q, k_k, k_v, k_wq, k_wk, k_wv, k_wo = jax.random.split(key, 8)

    # Positional-encoding-style deterministic input for queries (as in the
    # reference snippet: pos_encoding(zeros) == P[:, :L, :]).
    pos = jnp.arange(L, dtype=jnp.float32)[:, None]
    div = jnp.power(10000.0, jnp.arange(0, H, 2, dtype=jnp.float32) / H)
    ang = pos / div                                                   # (L, H//2)
    P = jnp.zeros((L, H), jnp.float32)
    P = P.at[:, 0::2].set(jnp.sin(ang)).at[:, 1::2].set(jnp.cos(ang))
    queries = jnp.broadcast_to(P[None], (B, L, H)).astype(jnp.float32)

    keys_in = jax.random.normal(k_k, (B, L, key_size), jnp.float32)
    values_in = jax.random.normal(k_v, (B, L, value_size), jnp.float32)
    valid_lens = jnp.array([3, 6], dtype=jnp.int32)

    # Deterministic parameter init (Linear without bias); stored as (in, out).
    scale = 1.0 / math.sqrt(H)
    Wq = jax.random.normal(k_wq, (query_size, H), jnp.float32) * scale
    Wk = jax.random.normal(k_wk, (key_size, H), jnp.float32) * scale
    Wv = jax.random.normal(k_wv, (value_size, H), jnp.float32) * scale
    Wo = jax.random.normal(k_wo, (H, H), jnp.float32) * scale

    out = multi_head_attention(queries, keys_in, values_in, valid_lens,
                               Wq, Wk, Wv, Wo, num_heads)
    out = jax.block_until_ready(out)

    ref = ref_mha(queries, keys_in, values_in, valid_lens,
                  Wq, Wk, Wv, Wo, num_heads)
    ref = jax.block_until_ready(ref)

    assert out.shape == (B, L, H)
    # With exact softmax division the kernel matches the HIGHEST-precision
    # reference to ~1e-6; the 2e-2 bound only leaves headroom for platforms
    # where one side's f32 matmuls run as reduced-precision bf16 MXU passes.
    err = float(jnp.max(jnp.abs(out - ref)))
    assert err < 2e-2, f"mismatch vs reference: max abs err {err}"

    print("KERNEL_OK")
</pallas_src>

<mosaic_0001>
module attributes {stable_mosaic.version = 11 : i64} {
  func.func @mha_kernel(%arg0: i32, %arg1: memref<2xi32, #tpu.memory_space<smem>>, %arg2: memref<16x32xf32, #tpu.memory_space<vmem>>, %arg3: memref<16x32xf32, #tpu.memory_space<vmem>>, %arg4: memref<16x32xf32, #tpu.memory_space<vmem>>, %arg5: memref<3x32x32xf32, #tpu.memory_space<vmem>>, %arg6: memref<32x32xf32, #tpu.memory_space<vmem>>, %arg7: memref<16x32xf32, #tpu.memory_space<vmem>>) attributes {dimension_semantics = [#tpu.dimension_semantics<arbitrary>], iteration_bounds = array<i64: 1>, scalar_prefetch = 1 : i64, scratch_operands = 0 : i64, tpu.core_type = #tpu.core_type<tc>, window_params = [{pipeline_mode = #tpu.pipeline_mode<synchronous>, transform_indices = @transform_0, window_bounds = array<i64: 16, 32>}, {pipeline_mode = #tpu.pipeline_mode<synchronous>, transform_indices = @transform_1, window_bounds = array<i64: 16, 32>}, {pipeline_mode = #tpu.pipeline_mode<synchronous>, transform_indices = @transform_2, window_bounds = array<i64: 16, 32>}, {pipeline_mode = #tpu.pipeline_mode<synchronous>, transform_indices = @transform_3, window_bounds = array<i64: 3, 32, 32>}, {pipeline_mode = #tpu.pipeline_mode<synchronous>, transform_indices = @transform_4, window_bounds = array<i64: 32, 32>}, {pipeline_mode = #tpu.pipeline_mode<synchronous>, transform_indices = @transform_5, window_bounds = array<i64: 16, 32>}]} {
    %c0 = arith.constant 0 : index
    %c0_0 = arith.constant 0 : index
    %0 = vector.load %arg2[%c0, %c0_0] : memref<16x32xf32, #tpu.memory_space<vmem>>, vector<16x32xf32>
    %c0_1 = arith.constant 0 : index
    %c0_2 = arith.constant 0 : index
    %1 = vector.load %arg3[%c0_1, %c0_2] : memref<16x32xf32, #tpu.memory_space<vmem>>, vector<16x32xf32>
    %c0_3 = arith.constant 0 : index
    %c0_4 = arith.constant 0 : index
    %2 = vector.load %arg4[%c0_3, %c0_4] : memref<16x32xf32, #tpu.memory_space<vmem>>, vector<16x32xf32>
    %c0_5 = arith.constant 0 : index
    %c0_6 = arith.constant 0 : index
    %c0_7 = arith.constant 0 : index
    %3 = vector.load %arg5[%c0_5, %c0_6, %c0_7] : memref<3x32x32xf32, #tpu.memory_space<vmem>>, vector<1x32x32xf32>
    %4 = vector.shape_cast %3 : vector<1x32x32xf32> to vector<32x32xf32>
    %c1 = arith.constant 1 : index
    %c0_8 = arith.constant 0 : index
    %c0_9 = arith.constant 0 : index
    %5 = vector.load %arg5[%c1, %c0_8, %c0_9] : memref<3x32x32xf32, #tpu.memory_space<vmem>>, vector<1x32x32xf32>
    %6 = vector.shape_cast %5 : vector<1x32x32xf32> to vector<32x32xf32>
    %c2 = arith.constant 2 : index
    %c0_10 = arith.constant 0 : index
    %c0_11 = arith.constant 0 : index
    %7 = vector.load %arg5[%c2, %c0_10, %c0_11] : memref<3x32x32xf32, #tpu.memory_space<vmem>>, vector<1x32x32xf32>
    %8 = vector.shape_cast %7 : vector<1x32x32xf32> to vector<32x32xf32>
    %c0_12 = arith.constant 0 : index
    %c0_13 = arith.constant 0 : index
    %9 = vector.load %arg6[%c0_12, %c0_13] : memref<32x32xf32, #tpu.memory_space<vmem>>, vector<32x32xf32>
    %cst = arith.constant dense<0.000000e+00> : vector<16x32xf32>
    %10 = tpu.matmul %0, %4, %cst {dimension_numbers = #tpu.dot_dimension_numbers<[1], [0], [0], [1], [0, 0, 1, 1], [], []>} : vector<16x32xf32>, vector<32x32xf32>, vector<16x32xf32> -> vector<16x32xf32>
    %cst_14 = arith.constant dense<0.000000e+00> : vector<16x32xf32>
    %11 = tpu.matmul %1, %6, %cst_14 {dimension_numbers = #tpu.dot_dimension_numbers<[1], [0], [0], [1], [0, 0, 1, 1], [], []>} : vector<16x32xf32>, vector<32x32xf32>, vector<16x32xf32> -> vector<16x32xf32>
    %cst_15 = arith.constant dense<0.000000e+00> : vector<16x32xf32>
    %12 = tpu.matmul %2, %8, %cst_15 {dimension_numbers = #tpu.dot_dimension_numbers<[1], [0], [0], [1], [0, 0, 1, 1], [], []>} : vector<16x32xf32>, vector<32x32xf32>, vector<16x32xf32> -> vector<16x32xf32>
    %13 = tpu.iota {dimensions = array<i32: 1>} : vector<8x8xi32>
    %c0_16 = arith.constant 0 : index
    %14 = memref.load %arg1[%c0_16] : memref<2xi32, #tpu.memory_space<smem>>
    %15 = vector.broadcast %14 : i32 to vector<8x8xi32>
    %16 = arith.cmpi slt, %13, %15 : vector<8x8xi32>
    %cst_17 = arith.constant 0.000000e+00 : f32
    %cst_18 = arith.constant -1.000000e+06 : f32
    %17 = vector.broadcast %cst_17 : f32 to vector<8x8xf32>
    %18 = vector.broadcast %cst_18 : f32 to vector<8x8xf32>
    %19 = arith.select %16, %17, %18 : vector<8x8xi1>, vector<8x8xf32>
    %20 = vector.extract_strided_slice %10 {offsets = [0, 0], sizes = [8, 32], strides = [1, 1]} : vector<16x32xf32> to vector<8x32xf32>
    %21 = vector.extract_strided_slice %11 {offsets = [0, 0], sizes = [8, 32], strides = [1, 1]} : vector<16x32xf32> to vector<8x32xf32>
    %22 = vector.extract_strided_slice %12 {offsets = [0, 0], sizes = [8, 32], strides = [1, 1]} : vector<16x32xf32> to vector<8x32xf32>
    %23 = vector.extract_strided_slice %20 {offsets = [0, 0], sizes = [8, 8], strides = [1, 1]} : vector<8x32xf32> to vector<8x8xf32>
    %24 = vector.extract_strided_slice %21 {offsets = [0, 0], sizes = [8, 8], strides = [1, 1]} : vector<8x32xf32> to vector<8x8xf32>
    %25 = vector.extract_strided_slice %22 {offsets = [0, 0], sizes = [8, 8], strides = [1, 1]} : vector<8x32xf32> to vector<8x8xf32>
    %cst_19 = arith.constant dense<0.000000e+00> : vector<8x8xf32>
    %26 = tpu.matmul %23, %24, %cst_19 {dimension_numbers = #tpu.dot_dimension_numbers<[1], [1], [0], [0], [0, 0, 1, 0], [], []>} : vector<8x8xf32>, vector<8x8xf32>, vector<8x8xf32> -> vector<8x8xf32>
    %27 = arith.addf %26, %19 : vector<8x8xf32>
    %cst_20 = arith.constant dense<0xFF800000> : vector<8xf32>
    %28 = vector.multi_reduction <maximumf>, %27, %cst_20 [1] : vector<8x8xf32> to vector<8xf32>
    %29 = vector.shape_cast %28 : vector<8xf32> to vector<8x1xf32>
    %30 = vector.broadcast %29 : vector<8x1xf32> to vector<8x8xf32>
    %31 = arith.subf %27, %30 : vector<8x8xf32>
    %32 = math.exp %31 : vector<8x8xf32>
    %cst_21 = arith.constant dense<0.000000e+00> : vector<8xf32>
    %33 = vector.multi_reduction <add>, %32, %cst_21 [1] : vector<8x8xf32> to vector<8xf32>
    %34 = vector.shape_cast %33 : vector<8xf32> to vector<8x1xf32>
    %35 = vector.broadcast %34 : vector<8x1xf32> to vector<8x8xf32>
    %36 = arith.divf %32, %35 : vector<8x8xf32>
    %cst_22 = arith.constant dense<0.000000e+00> : vector<8x8xf32>
    %37 = tpu.matmul %36, %25, %cst_22 {dimension_numbers = #tpu.dot_dimension_numbers<[1], [0], [0], [1], [0, 0, 1, 1], [], []>} : vector<8x8xf32>, vector<8x8xf32>, vector<8x8xf32> -> vector<8x8xf32>
    %38 = vector.extract_strided_slice %20 {offsets = [0, 8], sizes = [8, 8], strides = [1, 1]} : vector<8x32xf32> to vector<8x8xf32>
    %39 = vector.extract_strided_slice %21 {offsets = [0, 8], sizes = [8, 8], strides = [1, 1]} : vector<8x32xf32> to vector<8x8xf32>
    %40 = vector.extract_strided_slice %22 {offsets = [0, 8], sizes = [8, 8], strides = [1, 1]} : vector<8x32xf32> to vector<8x8xf32>
    %cst_23 = arith.constant dense<0.000000e+00> : vector<8x8xf32>
    %41 = tpu.matmul %38, %39, %cst_23 {dimension_numbers = #tpu.dot_dimension_numbers<[1], [1], [0], [0], [0, 0, 1, 0], [], []>} : vector<8x8xf32>, vector<8x8xf32>, vector<8x8xf32> -> vector<8x8xf32>
    %42 = arith.addf %41, %19 : vector<8x8xf32>
    %cst_24 = arith.constant dense<0xFF800000> : vector<8xf32>
    %43 = vector.multi_reduction <maximumf>, %42, %cst_24 [1] : vector<8x8xf32> to vector<8xf32>
    %44 = vector.shape_cast %43 : vector<8xf32> to vector<8x1xf32>
    %45 = vector.broadcast %44 : vector<8x1xf32> to vector<8x8xf32>
    %46 = arith.subf %42, %45 : vector<8x8xf32>
    %47 = math.exp %46 : vector<8x8xf32>
    %cst_25 = arith.constant dense<0.000000e+00> : vector<8xf32>
    %48 = vector.multi_reduction <add>, %47, %cst_25 [1] : vector<8x8xf32> to vector<8xf32>
    %49 = vector.shape_cast %48 : vector<8xf32> to vector<8x1xf32>
    %50 = vector.broadcast %49 : vector<8x1xf32> to vector<8x8xf32>
    %51 = arith.divf %47, %50 : vector<8x8xf32>
    %cst_26 = arith.constant dense<0.000000e+00> : vector<8x8xf32>
    %52 = tpu.matmul %51, %40, %cst_26 {dimension_numbers = #tpu.dot_dimension_numbers<[1], [0], [0], [1], [0, 0, 1, 1], [], []>} : vector<8x8xf32>, vector<8x8xf32>, vector<8x8xf32> -> vector<8x8xf32>
    %53 = vector.extract_strided_slice %20 {offsets = [0, 16], sizes = [8, 8], strides = [1, 1]} : vector<8x32xf32> to vector<8x8xf32>
    %54 = vector.extract_strided_slice %21 {offsets = [0, 16], sizes = [8, 8], strides = [1, 1]} : vector<8x32xf32> to vector<8x8xf32>
    %55 = vector.extract_strided_slice %22 {offsets = [0, 16], sizes = [8, 8], strides = [1, 1]} : vector<8x32xf32> to vector<8x8xf32>
    %cst_27 = arith.constant dense<0.000000e+00> : vector<8x8xf32>
    %56 = tpu.matmul %53, %54, %cst_27 {dimension_numbers = #tpu.dot_dimension_numbers<[1], [1], [0], [0], [0, 0, 1, 0], [], []>} : vector<8x8xf32>, vector<8x8xf32>, vector<8x8xf32> -> vector<8x8xf32>
    %57 = arith.addf %56, %19 : vector<8x8xf32>
    %cst_28 = arith.constant dense<0xFF800000> : vector<8xf32>
    %58 = vector.multi_reduction <maximumf>, %57, %cst_28 [1] : vector<8x8xf32> to vector<8xf32>
    %59 = vector.shape_cast %58 : vector<8xf32> to vector<8x1xf32>
    %60 = vector.broadcast %59 : vector<8x1xf32> to vector<8x8xf32>
    %61 = arith.subf %57, %60 : vector<8x8xf32>
    %62 = math.exp %61 : vector<8x8xf32>
    %cst_29 = arith.constant dense<0.000000e+00> : vector<8xf32>
    %63 = vector.multi_reduction <add>, %62, %cst_29 [1] : vector<8x8xf32> to vector<8xf32>
    %64 = vector.shape_cast %63 : vector<8xf32> to vector<8x1xf32>
    %65 = vector.broadcast %64 : vector<8x1xf32> to vector<8x8xf32>
    %66 = arith.divf %62, %65 : vector<8x8xf32>
    %cst_30 = arith.constant dense<0.000000e+00> : vector<8x8xf32>
    %67 = tpu.matmul %66, %55, %cst_30 {dimension_numbers = #tpu.dot_dimension_numbers<[1], [0], [0], [1], [0, 0, 1, 1], [], []>} : vector<8x8xf32>, vector<8x8xf32>, vector<8x8xf32> -> vector<8x8xf32>
    %68 = vector.extract_strided_slice %20 {offsets = [0, 24], sizes = [8, 8], strides = [1, 1]} : vector<8x32xf32> to vector<8x8xf32>
    %69 = vector.extract_strided_slice %21 {offsets = [0, 24], sizes = [8, 8], strides = [1, 1]} : vector<8x32xf32> to vector<8x8xf32>
    %70 = vector.extract_strided_slice %22 {offsets = [0, 24], sizes = [8, 8], strides = [1, 1]} : vector<8x32xf32> to vector<8x8xf32>
    %cst_31 = arith.constant dense<0.000000e+00> : vector<8x8xf32>
    %71 = tpu.matmul %68, %69, %cst_31 {dimension_numbers = #tpu.dot_dimension_numbers<[1], [1], [0], [0], [0, 0, 1, 0], [], []>} : vector<8x8xf32>, vector<8x8xf32>, vector<8x8xf32> -> vector<8x8xf32>
    %72 = arith.addf %71, %19 : vector<8x8xf32>
    %cst_32 = arith.constant dense<0xFF800000> : vector<8xf32>
    %73 = vector.multi_reduction <maximumf>, %72, %cst_32 [1] : vector<8x8xf32> to vector<8xf32>
    %74 = vector.shape_cast %73 : vector<8xf32> to vector<8x1xf32>
    %75 = vector.broadcast %74 : vector<8x1xf32> to vector<8x8xf32>
    %76 = arith.subf %72, %75 : vector<8x8xf32>
    %77 = math.exp %76 : vector<8x8xf32>
    %cst_33 = arith.constant dense<0.000000e+00> : vector<8xf32>
    %78 = vector.multi_reduction <add>, %77, %cst_33 [1] : vector<8x8xf32> to vector<8xf32>
    %79 = vector.shape_cast %78 : vector<8xf32> to vector<8x1xf32>
    %80 = vector.broadcast %79 : vector<8x1xf32> to vector<8x8xf32>
    %81 = arith.divf %77, %80 : vector<8x8xf32>
    %cst_34 = arith.constant dense<0.000000e+00> : vector<8x8xf32>
    %82 = tpu.matmul %81, %70, %cst_34 {dimension_numbers = #tpu.dot_dimension_numbers<[1], [0], [0], [1], [0, 0, 1, 1], [], []>} : vector<8x8xf32>, vector<8x8xf32>, vector<8x8xf32> -> vector<8x8xf32>
    %83 = tpu.concatenate %37, %52, %67, %82 in 1 : vector<8x8xf32>, vector<8x8xf32>, vector<8x8xf32>, vector<8x8xf32> -> vector<8x32xf32>
    %c1_35 = arith.constant 1 : index
    %84 = memref.load %arg1[%c1_35] : memref<2xi32, #tpu.memory_space<smem>>
    %85 = vector.broadcast %84 : i32 to vector<8x8xi32>
    %86 = arith.cmpi slt, %13, %85 : vector<8x8xi32>
    %cst_36 = arith.constant 0.000000e+00 : f32
    %cst_37 = arith.constant -1.000000e+06 : f32
    %87 = vector.broadcast %cst_36 : f32 to vector<8x8xf32>
    %88 = vector.broadcast %cst_37 : f32 to vector<8x8xf32>
    %89 = arith.select %86, %87, %88 : vector<8x8xi1>, vector<8x8xf32>
    %90 = vector.extract_strided_slice %10 {offsets = [8, 0], sizes = [8, 32], strides = [1, 1]} : vector<16x32xf32> to vector<8x32xf32>
    %91 = vector.extract_strided_slice %11 {offsets = [8, 0], sizes = [8, 32], strides = [1, 1]} : vector<16x32xf32> to vector<8x32xf32>
    %92 = vector.extract_strided_slice %12 {offsets = [8, 0], sizes = [8, 32], strides = [1, 1]} : vector<16x32xf32> to vector<8x32xf32>
    %93 = vector.extract_strided_slice %90 {offsets = [0, 0], sizes = [8, 8], strides = [1, 1]} : vector<8x32xf32> to vector<8x8xf32>
    %94 = vector.extract_strided_slice %91 {offsets = [0, 0], sizes = [8, 8], strides = [1, 1]} : vector<8x32xf32> to vector<8x8xf32>
    %95 = vector.extract_strided_slice %92 {offsets = [0, 0], sizes = [8, 8], strides = [1, 1]} : vector<8x32xf32> to vector<8x8xf32>
    %cst_38 = arith.constant dense<0.000000e+00> : vector<8x8xf32>
    %96 = tpu.matmul %93, %94, %cst_38 {dimension_numbers = #tpu.dot_dimension_numbers<[1], [1], [0], [0], [0, 0, 1, 0], [], []>} : vector<8x8xf32>, vector<8x8xf32>, vector<8x8xf32> -> vector<8x8xf32>
    %97 = arith.addf %96, %89 : vector<8x8xf32>
    %cst_39 = arith.constant dense<0xFF800000> : vector<8xf32>
    %98 = vector.multi_reduction <maximumf>, %97, %cst_39 [1] : vector<8x8xf32> to vector<8xf32>
    %99 = vector.shape_cast %98 : vector<8xf32> to vector<8x1xf32>
    %100 = vector.broadcast %99 : vector<8x1xf32> to vector<8x8xf32>
    %101 = arith.subf %97, %100 : vector<8x8xf32>
    %102 = math.exp %101 : vector<8x8xf32>
    %cst_40 = arith.constant dense<0.000000e+00> : vector<8xf32>
    %103 = vector.multi_reduction <add>, %102, %cst_40 [1] : vector<8x8xf32> to vector<8xf32>
    %104 = vector.shape_cast %103 : vector<8xf32> to vector<8x1xf32>
    %105 = vector.broadcast %104 : vector<8x1xf32> to vector<8x8xf32>
    %106 = arith.divf %102, %105 : vector<8x8xf32>
    %cst_41 = arith.constant dense<0.000000e+00> : vector<8x8xf32>
    %107 = tpu.matmul %106, %95, %cst_41 {dimension_numbers = #tpu.dot_dimension_numbers<[1], [0], [0], [1], [0, 0, 1, 1], [], []>} : vector<8x8xf32>, vector<8x8xf32>, vector<8x8xf32> -> vector<8x8xf32>
    %108 = vector.extract_strided_slice %90 {offsets = [0, 8], sizes = [8, 8], strides = [1, 1]} : vector<8x32xf32> to vector<8x8xf32>
    %109 = vector.extract_strided_slice %91 {offsets = [0, 8], sizes = [8, 8], strides = [1, 1]} : vector<8x32xf32> to vector<8x8xf32>
    %110 = vector.extract_strided_slice %92 {offsets = [0, 8], sizes = [8, 8], strides = [1, 1]} : vector<8x32xf32> to vector<8x8xf32>
    %cst_42 = arith.constant dense<0.000000e+00> : vector<8x8xf32>
    %111 = tpu.matmul %108, %109, %cst_42 {dimension_numbers = #tpu.dot_dimension_numbers<[1], [1], [0], [0], [0, 0, 1, 0], [], []>} : vector<8x8xf32>, vector<8x8xf32>, vector<8x8xf32> -> vector<8x8xf32>
    %112 = arith.addf %111, %89 : vector<8x8xf32>
    %cst_43 = arith.constant dense<0xFF800000> : vector<8xf32>
    %113 = vector.multi_reduction <maximumf>, %112, %cst_43 [1] : vector<8x8xf32> to vector<8xf32>
    %114 = vector.shape_cast %113 : vector<8xf32> to vector<8x1xf32>
    %115 = vector.broadcast %114 : vector<8x1xf32> to vector<8x8xf32>
    %116 = arith.subf %112, %115 : vector<8x8xf32>
    %117 = math.exp %116 : vector<8x8xf32>
    %cst_44 = arith.constant dense<0.000000e+00> : vector<8xf32>
    %118 = vector.multi_reduction <add>, %117, %cst_44 [1] : vector<8x8xf32> to vector<8xf32>
    %119 = vector.shape_cast %118 : vector<8xf32> to vector<8x1xf32>
    %120 = vector.broadcast %119 : vector<8x1xf32> to vector<8x8xf32>
    %121 = arith.divf %117, %120 : vector<8x8xf32>
    %cst_45 = arith.constant dense<0.000000e+00> : vector<8x8xf32>
    %122 = tpu.matmul %121, %110, %cst_45 {dimension_numbers = #tpu.dot_dimension_numbers<[1], [0], [0], [1], [0, 0, 1, 1], [], []>} : vector<8x8xf32>, vector<8x8xf32>, vector<8x8xf32> -> vector<8x8xf32>
    %123 = vector.extract_strided_slice %90 {offsets = [0, 16], sizes = [8, 8], strides = [1, 1]} : vector<8x32xf32> to vector<8x8xf32>
    %124 = vector.extract_strided_slice %91 {offsets = [0, 16], sizes = [8, 8], strides = [1, 1]} : vector<8x32xf32> to vector<8x8xf32>
    %125 = vector.extract_strided_slice %92 {offsets = [0, 16], sizes = [8, 8], strides = [1, 1]} : vector<8x32xf32> to vector<8x8xf32>
    %cst_46 = arith.constant dense<0.000000e+00> : vector<8x8xf32>
    %126 = tpu.matmul %123, %124, %cst_46 {dimension_numbers = #tpu.dot_dimension_numbers<[1], [1], [0], [0], [0, 0, 1, 0], [], []>} : vector<8x8xf32>, vector<8x8xf32>, vector<8x8xf32> -> vector<8x8xf32>
    %127 = arith.addf %126, %89 : vector<8x8xf32>
    %cst_47 = arith.constant dense<0xFF800000> : vector<8xf32>
    %128 = vector.multi_reduction <maximumf>, %127, %cst_47 [1] : vector<8x8xf32> to vector<8xf32>
    %129 = vector.shape_cast %128 : vector<8xf32> to vector<8x1xf32>
    %130 = vector.broadcast %129 : vector<8x1xf32> to vector<8x8xf32>
    %131 = arith.subf %127, %130 : vector<8x8xf32>
    %132 = math.exp %131 : vector<8x8xf32>
    %cst_48 = arith.constant dense<0.000000e+00> : vector<8xf32>
    %133 = vector.multi_reduction <add>, %132, %cst_48 [1] : vector<8x8xf32> to vector<8xf32>
    %134 = vector.shape_cast %133 : vector<8xf32> to vector<8x1xf32>
    %135 = vector.broadcast %134 : vector<8x1xf32> to vector<8x8xf32>
    %136 = arith.divf %132, %135 : vector<8x8xf32>
    %cst_49 = arith.constant dense<0.000000e+00> : vector<8x8xf32>
    %137 = tpu.matmul %136, %125, %cst_49 {dimension_numbers = #tpu.dot_dimension_numbers<[1], [0], [0], [1], [0, 0, 1, 1], [], []>} : vector<8x8xf32>, vector<8x8xf32>, vector<8x8xf32> -> vector<8x8xf32>
    %138 = vector.extract_strided_slice %90 {offsets = [0, 24], sizes = [8, 8], strides = [1, 1]} : vector<8x32xf32> to vector<8x8xf32>
    %139 = vector.extract_strided_slice %91 {offsets = [0, 24], sizes = [8, 8], strides = [1, 1]} : vector<8x32xf32> to vector<8x8xf32>
    %140 = vector.extract_strided_slice %92 {offsets = [0, 24], sizes = [8, 8], strides = [1, 1]} : vector<8x32xf32> to vector<8x8xf32>
    %cst_50 = arith.constant dense<0.000000e+00> : vector<8x8xf32>
    %141 = tpu.matmul %138, %139, %cst_50 {dimension_numbers = #tpu.dot_dimension_numbers<[1], [1], [0], [0], [0, 0, 1, 0], [], []>} : vector<8x8xf32>, vector<8x8xf32>, vector<8x8xf32> -> vector<8x8xf32>
    %142 = arith.addf %141, %89 : vector<8x8xf32>
    %cst_51 = arith.constant dense<0xFF800000> : vector<8xf32>
    %143 = vector.multi_reduction <maximumf>, %142, %cst_51 [1] : vector<8x8xf32> to vector<8xf32>
    %144 = vector.shape_cast %143 : vector<8xf32> to vector<8x1xf32>
    %145 = vector.broadcast %144 : vector<8x1xf32> to vector<8x8xf32>
    %146 = arith.subf %142, %145 : vector<8x8xf32>
    %147 = math.exp %146 : vector<8x8xf32>
    %cst_52 = arith.constant dense<0.000000e+00> : vector<8xf32>
    %148 = vector.multi_reduction <add>, %147, %cst_52 [1] : vector<8x8xf32> to vector<8xf32>
    %149 = vector.shape_cast %148 : vector<8xf32> to vector<8x1xf32>
    %150 = vector.broadcast %149 : vector<8x1xf32> to vector<8x8xf32>
    %151 = arith.divf %147, %150 : vector<8x8xf32>
    %cst_53 = arith.constant dense<0.000000e+00> : vector<8x8xf32>
    %152 = tpu.matmul %151, %140, %cst_53 {dimension_numbers = #tpu.dot_dimension_numbers<[1], [0], [0], [1], [0, 0, 1, 1], [], []>} : vector<8x8xf32>, vector<8x8xf32>, vector<8x8xf32> -> vector<8x8xf32>
    %153 = tpu.concatenate %107, %122, %137, %152 in 1 : vector<8x8xf32>, vector<8x8xf32>, vector<8x8xf32>, vector<8x8xf32> -> vector<8x32xf32>
    %154 = tpu.concatenate %83, %153 in 0 : vector<8x32xf32>, vector<8x32xf32> -> vector<16x32xf32>
    %cst_54 = arith.constant dense<0.000000e+00> : vector<16x32xf32>
    %155 = tpu.matmul %154, %9, %cst_54 {dimension_numbers = #tpu.dot_dimension_numbers<[1], [0], [0], [1], [0, 0, 1, 1], [], []>} : vector<16x32xf32>, vector<32x32xf32>, vector<16x32xf32> -> vector<16x32xf32>
    %c0_55 = arith.constant 0 : index
    %c0_56 = arith.constant 0 : index
    %156 = vector.load %arg7[%c0_55, %c0_56] : memref<16x32xf32, #tpu.memory_space<vmem>>, vector<16x32xf32>
    tpu.vector_store %arg7[%c0_55, %c0_56], %155 {strides = array<i32>} : memref<16x32xf32, #tpu.memory_space<vmem>>, vector<16x32xf32>,
    return
  }
  func.func @transform_0(%arg0: i32, %arg1: memref<2xi32, #tpu.memory_space<smem>>) -> (i32, i32) {
    %c0_i32 = arith.constant 0 : i32
    %c0_i32_0 = arith.constant 0 : i32
    %c0_i32_1 = arith.constant 0 : i32
    return %c0_i32, %c0_i32_0 : i32, i32
  }
  func.func @transform_1(%arg0: i32, %arg1: memref<2xi32, #tpu.memory_space<smem>>) -> (i32, i32) {
    %c0_i32 = arith.constant 0 : i32
    %c0_i32_0 = arith.constant 0 : i32
    %c0_i32_1 = arith.constant 0 : i32
    return %c0_i32, %c0_i32_0 : i32, i32
  }
  func.func @transform_2(%arg0: i32, %arg1: memref<2xi32, #tpu.memory_space<smem>>) -> (i32, i32) {
    %c0_i32 = arith.constant 0 : i32
    %c0_i32_0 = arith.constant 0 : i32
    %c0_i32_1 = arith.constant 0 : i32
    return %c0_i32, %c0_i32_0 : i32, i32
  }
  func.func @transform_3(%arg0: i32, %arg1: memref<2xi32, #tpu.memory_space<smem>>) -> (i32, i32, i32) {
    %c0_i32 = arith.constant 0 : i32
    %c0_i32_0 = arith.constant 0 : i32
    %c0_i32_1 = arith.constant 0 : i32
    %c0_i32_2 = arith.constant 0 : i32
    return %c0_i32, %c0_i32_0, %c0_i32_1 : i32, i32, i32
  }
  func.func @transform_4(%arg0: i32, %arg1: memref<2xi32, #tpu.memory_space<smem>>) -> (i32, i32) {
    %c0_i32 = arith.constant 0 : i32
    %c0_i32_0 = arith.constant 0 : i32
    %c0_i32_1 = arith.constant 0 : i32
    return %c0_i32, %c0_i32_0 : i32, i32
  }
  func.func @transform_5(%arg0: i32, %arg1: memref<2xi32, #tpu.memory_space<smem>>) -> (i32, i32) {
    %c0_i32 = arith.constant 0 : i32
    %c0_i32_0 = arith.constant 0 : i32
    %c0_i32_1 = arith.constant 0 : i32
    return %c0_i32, %c0_i32_0 : i32, i32
  }
}

</mosaic_0001>

<llo_original>
// kernel: tpu_custom_call.1
$region0: #{tpu_custom_call.1}
  #allocation0 [shape = 'u32[]', space=smem, size = 0x4, offset = 0x4, fixed_abs, tag = 'smem constant byte address 0x4 - core index']
  #allocation1 [shape = 'u32[144,128]{1,0:T(1,128)}', space=vmem, size = 0x12000, scoped, tag = 'internal scratch']
  #allocation2 [shape = 's32[1]{0}', space=sflag, size = 0x4, scoped, tag = 'scoped memory for tpu_custom_call.1']
  #allocation3 [shape = 'u8[512]{0}', space=smem, size = 0x200, scoped, tag = 'prefetched SMEM operand 0']
  %s0 = inlined_call_operand.hbm [shape: s32[2], index: 0, kind: input, shape index: {}]
  %s1 = inlined_call_operand.hbm [shape: f32[16,32], index: 1, kind: input, shape index: {}]
  %s2 = inlined_call_operand.hbm [shape: f32[16,32], index: 2, kind: input, shape index: {}]
  %s3 = inlined_call_operand.hbm [shape: f32[16,32], index: 3, kind: input, shape index: {}]
  %s4 = inlined_call_operand.hbm [shape: f32[3,32,32], index: 4, kind: input, shape index: {}]
  %s5 = inlined_call_operand.hbm [shape: f32[32,32], index: 5, kind: input, shape index: {}]
  %s6 = inlined_call_operand.hbm [shape: f32[16,32], index: 6, kind: output, shape index: {}]
  %s7 = sld [smem:[#allocation0]]
  $region50: #{tpu_custom_call.1} parent=0
    _
  %s9 = ssub.s32 1, %s7
  %s10 = scalar_select 0, %s9, %s7
  %12 = dma.hbm_to_smem %s0, 16, [#allocation3], [#allocation2]
  %13 = dma.done [#allocation2], 16
  %14 = sfence
  $region1: #{tpu_custom_call.1} parent=0
    #allocation4 [shape = 'u8[8192]{0}', space=vmem, size = 0x2000, scoped, tag = 'input window, operand 1, single buffered']
    #allocation5 [shape = 's32[1]{0}', space=sflag, size = 0x4, scoped, tag = 'scoped memory for tpu_custom_call.1']
    #allocation6 [shape = 's32[1]{0}', space=sflag, size = 0x4, scoped, tag = 'scoped memory for tpu_custom_call.1']
    #allocation7 [shape = 'u8[8192]{0}', space=vmem, size = 0x2000, scoped, tag = 'input window, operand 2, single buffered']
    #allocation8 [shape = 's32[1]{0}', space=sflag, size = 0x4, scoped, tag = 'scoped memory for tpu_custom_call.1']
    #allocation9 [shape = 'u8[8192]{0}', space=vmem, size = 0x2000, scoped, tag = 'input window, operand 3, single buffered']
    #allocation10 [shape = 'u8[49152]{0}', space=vmem, size = 0xc000, scoped, tag = 'input window, operand 4, single buffered']
    #allocation11 [shape = 's32[1]{0}', space=sflag, size = 0x4, scoped, tag = 'scoped memory for tpu_custom_call.1']
    #allocation12 [shape = 'u8[16384]{0}', space=vmem, size = 0x4000, scoped, tag = 'input window, operand 5, single buffered']
    #allocation13 [shape = 'u8[8192]{0}', space=vmem, size = 0x2000, scoped, tag = 'output window, operand 0, single buffered']
    %15 = vsyncpa [#allocation5], 0
    %16 = vsyncpa [#allocation8], 0
    %17 = vsyncpa [#allocation11], 0
    %18 = vsyncpa [#allocation6], 0
    // Predicated region
    $region2: #{tpu_custom_call.1} parent=1 // pred_check
      _
    $region3: #{tpu_custom_call.1} parent=1 // pred_check_branch
      %20 = sbr.rel (0) target = $region5
    $region4: #{tpu_custom_call.1} parent=1 // pred_region
      %s22 = ssub.s32 256, 256
      %23 = vsyncadd [#allocation5], %s22
      %s24 = sshll.u32 [#allocation4], 4
      %s25 = int_to_ptr.vmem [resolvable:$true] %s24
      %30 = dma.hbm_to_vmem [thread:$0]  %s1, 256, %s25, [#allocation5], 128, 128, 8
    $region5: #{tpu_custom_call.1} parent=1 // pred_fallthru
      _
    // Predicated region
    $region6: #{tpu_custom_call.1} parent=1 // pred_check
      _
    $region7: #{tpu_custom_call.1} parent=1 // pred_check_branch
      %32 = sbr.rel (0) target = $region9
    $region8: #{tpu_custom_call.1} parent=1 // pred_region
      %s34 = ssub.s32 256, 256
      %35 = vsyncadd [#allocation8], %s34
      %s36 = sshll.u32 [#allocation7], 4
      %s37 = int_to_ptr.vmem [resolvable:$true] %s36
      %42 = dma.hbm_to_vmem [thread:$0]  %s2, 256, %s37, [#allocation8], 128, 128, 8
    $region9: #{tpu_custom_call.1} parent=1 // pred_fallthru
      _
    // Predicated region
    $region10: #{tpu_custom_call.1} parent=1 // pred_check
      _
    $region11: #{tpu_custom_call.1} parent=1 // pred_check_branch
      %44 = sbr.rel (0) target = $region13
    $region12: #{tpu_custom_call.1} parent=1 // pred_region
      %s46 = ssub.s32 256, 256
      %47 = vsyncadd [#allocation8], %s46
      %s48 = sshll.u32 [#allocation9], 4
      %s49 = int_to_ptr.vmem [resolvable:$true] %s48
      %54 = dma.hbm_to_vmem [thread:$0]  %s3, 256, %s49, [#allocation8], 128, 128, 8
    $region13: #{tpu_custom_call.1} parent=1 // pred_fallthru
      _
    // Predicated region
    $region14: #{tpu_custom_call.1} parent=1 // pred_check
      _
    $region15: #{tpu_custom_call.1} parent=1 // pred_check_branch
      %56 = sbr.rel (0) target = $region17
    $region16: #{tpu_custom_call.1} parent=1 // pred_region
      %s58 = ssub.s32 1536, 1536
      %59 = vsyncadd [#allocation11], %s58
      %s60 = sshll.u32 [#allocation10], 4
      %s61 = int_to_ptr.vmem [resolvable:$true] %s60
      %66 = dma.hbm_to_vmem [thread:$0]  %s4, 1536, %s61, [#allocation11], 128, 128, 8
    $region17: #{tpu_custom_call.1} parent=1 // pred_fallthru
      _
    // Predicated region
    $region18: #{tpu_custom_call.1} parent=1 // pred_check
      _
    $region19: #{tpu_custom_call.1} parent=1 // pred_check_branch
      %68 = sbr.rel (0) target = $region21
    $region20: #{tpu_custom_call.1} parent=1 // pred_region
      %s70 = ssub.s32 512, 512
      %71 = vsyncadd [#allocation11], %s70
      %s72 = sshll.u32 [#allocation12], 4
      %s73 = int_to_ptr.vmem [resolvable:$true] %s72
      %78 = dma.hbm_to_vmem [thread:$0]  %s5, 512, %s73, [#allocation11], 128, 128, 8
    $region21: #{tpu_custom_call.1} parent=1 // pred_fallthru
      _
    // Predicated region
    $region22: #{tpu_custom_call.1} parent=1 // pred_check
      _
    $region23: #{tpu_custom_call.1} parent=1 // pred_check_branch
      %80 = sbr.rel (0) target = $region25
    $region24: #{tpu_custom_call.1} parent=1 // pred_region
      %81 = dma.done [#allocation5], 256
    $region25: #{tpu_custom_call.1} parent=1 // pred_fallthru
      _
    // Predicated region
    $region26: #{tpu_custom_call.1} parent=1 // pred_check
      _
    $region27: #{tpu_custom_call.1} parent=1 // pred_check_branch
      %83 = sbr.rel (0) target = $region29
    $region28: #{tpu_custom_call.1} parent=1 // pred_region
      %84 = dma.done [#allocation8], 256
    $region29: #{tpu_custom_call.1} parent=1 // pred_fallthru
      _
    // Predicated region
    $region30: #{tpu_custom_call.1} parent=1 // pred_check
      _
    $region31: #{tpu_custom_call.1} parent=1 // pred_check_branch
      %86 = sbr.rel (0) target = $region33
    $region32: #{tpu_custom_call.1} parent=1 // pred_region
      %87 = dma.done [#allocation8], 256
    $region33: #{tpu_custom_call.1} parent=1 // pred_fallthru
      _
    // Predicated region
    $region34: #{tpu_custom_call.1} parent=1 // pred_check
      _
    $region35: #{tpu_custom_call.1} parent=1 // pred_check_branch
      %89 = sbr.rel (0) target = $region37
    $region36: #{tpu_custom_call.1} parent=1 // pred_region
      %90 = dma.done [#allocation11], 1536
    $region37: #{tpu_custom_call.1} parent=1 // pred_fallthru
      _
    // Predicated region
    $region38: #{tpu_custom_call.1} parent=1 // pred_check
      _
    $region39: #{tpu_custom_call.1} parent=1 // pred_check_branch
      %92 = sbr.rel (0) target = $region41
    $region40: #{tpu_custom_call.1} parent=1 // pred_region
      %93 = dma.done [#allocation11], 512
    $region41: #{tpu_custom_call.1} parent=1 // pred_fallthru
      _
    %v94 = vld [vmem:[#allocation4] sm:$0xff]
    %v95 = vld [vmem:[#allocation4 + $0x8] sm:$0xff]
    %v96 = vld [vmem:[#allocation7] sm:$0xff]
    %v97 = vld [vmem:[#allocation7 + $0x8] sm:$0xff]
    %v98 = vld [vmem:[#allocation9] sm:$0xff]
    %v99 = vld [vmem:[#allocation9 + $0x8] sm:$0xff]
    %v100 = vld [vmem:[#allocation10] sm:$0xff]
    %v101 = vld [vmem:[#allocation10 + $0x8] sm:$0xff]
    %v102 = vld [vmem:[#allocation10 + $0x10] sm:$0xff]
    %v103 = vld [vmem:[#allocation10 + $0x18] sm:$0xff]
    %s104 = scalar_lea.vmem [#allocation10], 32
    %v105 = vld [vmem:[%s104] sm:$0xff]
    %v106 = vld [vmem:[%s104 + $0x8] sm:$0xff]
    %v107 = vld [vmem:[%s104 + $0x10] sm:$0xff]
    %v108 = vld [vmem:[%s104 + $0x18] sm:$0xff]
    %s109 = scalar_lea.vmem [#allocation10], 64
    %v110 = vld [vmem:[%s109] sm:$0xff]
    %v111 = vld [vmem:[%s109 + $0x8] sm:$0xff]
    %v112 = vld [vmem:[%s109 + $0x10] sm:$0xff]
    %v113 = vld [vmem:[%s109 + $0x18] sm:$0xff]
    %v114 = vld [vmem:[#allocation12] sm:$0xff]
    %v115 = vld [vmem:[#allocation12 + $0x8] sm:$0xff]
    %v116 = vld [vmem:[#allocation12 + $0x10] sm:$0xff]
    %v117 = vld [vmem:[#allocation12 + $0x18] sm:$0xff]
    %vm118 = vcmask 261120
    %v120 = vsel %vm118, %v94, 0
    %v123 = vsel %vm118, %v95, 0
    %125 = vmatprep.subr.mxu0 0.0
    %126 = vmatpush1.msra.mxu0 0.0
    %127 = vmatprep.subr.mxu0 0.0
    %128 = vmatpush1.msra.mxu0 0.0
    %129 = vmatprep.subr.mxu0 0.0
    %130 = vmatpush1.msra.mxu0 0.0
    %131 = vmatprep.subr.mxu0 0.0
    %132 = vmatpush1.msra.mxu0 0.0
    %133 = vmatprep.subr.mxu0 0.0
    %134 = vmatpush1.msra.mxu0 0.0
    %135 = vmatprep.subr.mxu0 0.0
    %136 = vmatpush1.msra.mxu0 0.0
    %137 = vmatprep.subr.mxu0 0.0
    %138 = vmatpush1.msra.mxu0 0.0
    %139 = vmatprep.subr.mxu0 0.0
    %140 = vmatpush1.msra.mxu0 0.0
    %141 = vmatprep.subr.mxu0 0.0
    %142 = vmatpush1.msra.mxu0 0.0
    %143 = vmatprep.subr.mxu0 0.0
    %144 = vmatpush1.msra.mxu0 0.0
    %145 = vmatprep.subr.mxu0 0.0
    %146 = vmatpush1.msra.mxu0 0.0
    %147 = vmatprep.subr.mxu0 0.0
    %148 = vmatpush1.msra.mxu0 0.0
    %149 = vmatprep.subr.mxu0 0.0
    %150 = vmatpush1.msra.mxu0 %v103
    %151 = vmatprep.subr.mxu0 0.0
    %152 = vmatpush1.msra.mxu0 %v102
    %153 = vmatprep.subr.mxu0 0.0
    %154 = vmatpush1.msra.mxu0 %v101
    %155 = vmatprep.subr.mxu0 0.0
    %156 = vmatpush1.msra.mxu0 %v100
    %157 = vmatprep.subr.mxu0 0.0
    %158 = vmatpush2.msra.mxu0 0.0
    %159 = vmatprep.subr.mxu0 0.0
    %160 = vmatpush2.msra.mxu0 0.0
    %161 = vmatprep.subr.mxu0 0.0
    %162 = vmatpush2.msra.mxu0 0.0
    %163 = vmatprep.subr.mxu0 0.0
    %164 = vmatpush2.msra.mxu0 0.0
    %165 = vmatprep.subr.mxu0 0.0
    %166 = vmatpush2.msra.mxu0 0.0
    %167 = vmatprep.subr.mxu0 0.0
    %168 = vmatpush2.msra.mxu0 0.0
    %169 = vmatprep.subr.mxu0 0.0
    %170 = vmatpush2.msra.mxu0 0.0
    %171 = vmatprep.subr.mxu0 0.0
    %172 = vmatpush2.msra.mxu0 0.0
    %173 = vmatprep.subr.mxu0 0.0
    %174 = vmatpush2.msra.mxu0 0.0
    %175 = vmatprep.subr.mxu0 0.0
    %176 = vmatpush2.msra.mxu0 0.0
    %177 = vmatprep.subr.mxu0 0.0
    %178 = vmatpush2.msra.mxu0 0.0
    %179 = vmatprep.subr.mxu0 0.0
    %180 = vmatpush2.msra.mxu0 0.0
    %181 = vmatprep.subr.mxu0 0.0
    %182 = vmatpush2.msra.mxu0 0.0
    %183 = vmatprep.subr.mxu0 0.0
    %184 = vmatpush2.msra.mxu0 0.0
    %185 = vmatprep.subr.mxu0 0.0
    %186 = vmatpush2.msra.mxu0 0.0
    %187 = vmatprep.subr.mxu0 0.0
    %188 = vmatpush2.msra.mxu0 0.0
    %189 = vmatprep.mubr.f32.mxu0 0.0
    %190 = vmatmul.mubr.f32.gmra.mxu0 %v120
    %v191 = vpop.f32.mrf.mxu0
    %v192 = vadd.f32 0.0, %v191
    %v193 = vpop.f32.mrf.mxu0
    %194 = vmatprep.mubr.f32.mxu0 0.0
    %195 = vmatmul.mubr.f32.gmra.mxu0 %v123
    %v196 = vpop.f32.mrf.mxu0
    %v197 = vadd.f32 0.0, %v196
    %v198 = vpop.f32.mrf.mxu0
    %199 = vdwg.mxu0
    %v201 = vsel %vm118, %v96, 0
    %v204 = vsel %vm118, %v97, 0
    %206 = vmatprep.subr.mxu0 0.0
    %207 = vmatpush1.msra.mxu0 0.0
    %208 = vmatprep.subr.mxu0 0.0
    %209 = vmatpush1.msra.mxu0 0.0
    %210 = vmatprep.subr.mxu0 0.0
    %211 = vmatpush1.msra.mxu0 0.0
    %212 = vmatprep.subr.mxu0 0.0
    %213 = vmatpush1.msra.mxu0 0.0
    %214 = vmatprep.subr.mxu0 0.0
    %215 = vmatpush1.msra.mxu0 0.0
    %216 = vmatprep.subr.mxu0 0.0
    %217 = vmatpush1.msra.mxu0 0.0
    %218 = vmatprep.subr.mxu0 0.0
    %219 = vmatpush1.msra.mxu0 0.0
    %220 = vmatprep.subr.mxu0 0.0
    %221 = vmatpush1.msra.mxu0 0.0
    %222 = vmatprep.subr.mxu0 0.0
    %223 = vmatpush1.msra.mxu0 0.0
    %224 = vmatprep.subr.mxu0 0.0
    %225 = vmatpush1.msra.mxu0 0.0
    %226 = vmatprep.subr.mxu0 0.0
    %227 = vmatpush1.msra.mxu0 0.0
    %228 = vmatprep.subr.mxu0 0.0
    %229 = vmatpush1.msra.mxu0 0.0
    %230 = vmatprep.subr.mxu0 0.0
    %231 = vmatpush1.msra.mxu0 %v108
    %232 = vmatprep.subr.mxu0 0.0
    %233 = vmatpush1.msra.mxu0 %v107
    %234 = vmatprep.subr.mxu0 0.0
    %235 = vmatpush1.msra.mxu0 %v106
    %236 = vmatprep.subr.mxu0 0.0
    %237 = vmatpush1.msra.mxu0 %v105
    %238 = vmatprep.subr.mxu0 0.0
    %239 = vmatpush2.msra.mxu0 0.0
    %240 = vmatprep.subr.mxu0 0.0
    %241 = vmatpush2.msra.mxu0 0.0
    %242 = vmatprep.subr.mxu0 0.0
    %243 = vmatpush2.msra.mxu0 0.0
    %244 = vmatprep.subr.mxu0 0.0
    %245 = vmatpush2.msra.mxu0 0.0
    %246 = vmatprep.subr.mxu0 0.0
    %247 = vmatpush2.msra.mxu0 0.0
    %248 = vmatprep.subr.mxu0 0.0
    %249 = vmatpush2.msra.mxu0 0.0
    %250 = vmatprep.subr.mxu0 0.0
    %251 = vmatpush2.msra.mxu0 0.0
    %252 = vmatprep.subr.mxu0 0.0
    %253 = vmatpush2.msra.mxu0 0.0
    %254 = vmatprep.subr.mxu0 0.0
    %255 = vmatpush2.msra.mxu0 0.0
    %256 = vmatprep.subr.mxu0 0.0
    %257 = vmatpush2.msra.mxu0 0.0
    %258 = vmatprep.subr.mxu0 0.0
    %259 = vmatpush2.msra.mxu0 0.0
    %260 = vmatprep.subr.mxu0 0.0
    %261 = vmatpush2.msra.mxu0 0.0
    %262 = vmatprep.subr.mxu0 0.0
    %263 = vmatpush2.msra.mxu0 0.0
    %264 = vmatprep.subr.mxu0 0.0
    %265 = vmatpush2.msra.mxu0 0.0
    %266 = vmatprep.subr.mxu0 0.0
    %267 = vmatpush2.msra.mxu0 0.0
    %268 = vmatprep.subr.mxu0 0.0
    %269 = vmatpush2.msra.mxu0 0.0
    %270 = vmatprep.mubr.f32.mxu0 0.0
    %271 = vmatmul.mubr.f32.gmra.mxu0 %v201
    %v272 = vpop.f32.mrf.mxu0
    %v273 = vadd.f32 0.0, %v272
    %v274 = vpop.f32.mrf.mxu0
    %275 = vmatprep.mubr.f32.mxu0 0.0
    %276 = vmatmul.mubr.f32.gmra.mxu0 %v204
    %v277 = vpop.f32.mrf.mxu0
    %v278 = vadd.f32 0.0, %v277
    %v279 = vpop.f32.mrf.mxu0
    %280 = vdwg.mxu0
    %v282 = vsel %vm118, %v98, 0
    %v285 = vsel %vm118, %v99, 0
    %287 = vmatprep.subr.mxu0 0.0
    %288 = vmatpush1.msra.mxu0 0.0
    %289 = vmatprep.subr.mxu0 0.0
    %290 = vmatpush1.msra.mxu0 0.0
    %291 = vmatprep.subr.mxu0 0.0
    %292 = vmatpush1.msra.mxu0 0.0
    %293 = vmatprep.subr.mxu0 0.0
    %294 = vmatpush1.msra.mxu0 0.0
    %295 = vmatprep.subr.mxu0 0.0
    %296 = vmatpush1.msra.mxu0 0.0
    %297 = vmatprep.subr.mxu0 0.0
    %298 = vmatpush1.msra.mxu0 0.0
    %299 = vmatprep.subr.mxu0 0.0
    %300 = vmatpush1.msra.mxu0 0.0
    %301 = vmatprep.subr.mxu0 0.0
    %302 = vmatpush1.msra.mxu0 0.0
    %303 = vmatprep.subr.mxu0 0.0
    %304 = vmatpush1.msra.mxu0 0.0
    %305 = vmatprep.subr.mxu0 0.0
    %306 = vmatpush1.msra.mxu0 0.0
    %307 = vmatprep.subr.mxu0 0.0
    %308 = vmatpush1.msra.mxu0 0.0
    %309 = vmatprep.subr.mxu0 0.0
    %310 = vmatpush1.msra.mxu0 0.0
    %311 = vmatprep.subr.mxu0 0.0
    %312 = vmatpush1.msra.mxu0 %v113
    %313 = vmatprep.subr.mxu0 0.0
    %314 = vmatpush1.msra.mxu0 %v112
    %315 = vmatprep.subr.mxu0 0.0
    %316 = vmatpush1.msra.mxu0 %v111
    %317 = vmatprep.subr.mxu0 0.0
    %318 = vmatpush1.msra.mxu0 %v110
    %319 = vmatprep.subr.mxu0 0.0
    %320 = vmatpush2.msra.mxu0 0.0
    %321 = vmatprep.subr.mxu0 0.0
    %322 = vmatpush2.msra.mxu0 0.0
    %323 = vmatprep.subr.mxu0 0.0
    %324 = vmatpush2.msra.mxu0 0.0
    %325 = vmatprep.subr.mxu0 0.0
    %326 = vmatpush2.msra.mxu0 0.0
    %327 = vmatprep.subr.mxu0 0.0
    %328 = vmatpush2.msra.mxu0 0.0
    %329 = vmatprep.subr.mxu0 0.0
    %330 = vmatpush2.msra.mxu0 0.0
    %331 = vmatprep.subr.mxu0 0.0
    %332 = vmatpush2.msra.mxu0 0.0
    %333 = vmatprep.subr.mxu0 0.0
    %334 = vmatpush2.msra.mxu0 0.0
    %335 = vmatprep.subr.mxu0 0.0
    %336 = vmatpush2.msra.mxu0 0.0
    %337 = vmatprep.subr.mxu0 0.0
    %338 = vmatpush2.msra.mxu0 0.0
    %339 = vmatprep.subr.mxu0 0.0
    %340 = vmatpush2.msra.mxu0 0.0
    %341 = vmatprep.subr.mxu0 0.0
    %342 = vmatpush2.msra.mxu0 0.0
    %343 = vmatprep.subr.mxu0 0.0
    %344 = vmatpush2.msra.mxu0 0.0
    %345 = vmatprep.subr.mxu0 0.0
    %346 = vmatpush2.msra.mxu0 0.0
    %347 = vmatprep.subr.mxu0 0.0
    %348 = vmatpush2.msra.mxu0 0.0
    %349 = vmatprep.subr.mxu0 0.0
    %350 = vmatpush2.msra.mxu0 0.0
    %351 = vmatprep.mubr.f32.mxu0 0.0
    %352 = vmatmul.mubr.f32.gmra.mxu0 %v282
    %v353 = vpop.f32.mrf.mxu0
    %v354 = vadd.f32 0.0, %v353
    %v355 = vpop.f32.mrf.mxu0
    %356 = vmatprep.mubr.f32.mxu0 0.0
    %357 = vmatmul.mubr.f32.gmra.mxu0 %v285
    %v358 = vpop.f32.mrf.mxu0
    %v359 = vadd.f32 0.0, %v358
    %v360 = vpop.f32.mrf.mxu0
    %361 = vdwg.mxu0
    %v362 = vlaneseq
    %v363 = vand.u32 %v362, 127
    %s364 = sld [smem:[#allocation3]]
    %v365 = vstv %s364
    %vm366 = vcmp.lt.s32.totalorder %v363, %v365
    %v367 = vsel %vm366, 0.0, -1000000.0
    %vm368 = vcmask 64512
    %v370 = vsel %vm368, %v192, 0
    %v373 = vsel %vm368, %v273, 0
    %375 = vmatprep.subr.mxu0 0.0
    %376 = vmatpush1.xpose.msra.mxu0 0.0
    %377 = vmatprep.subr.mxu0 0.0
    %378 = vmatpush1.xpose.msra.mxu0 0.0
    %379 = vmatprep.subr.mxu0 0.0
    %380 = vmatpush1.xpose.msra.mxu0 0.0
    %381 = vmatprep.subr.mxu0 0.0
    %382 = vmatpush1.xpose.msra.mxu0 0.0
    %383 = vmatprep.subr.mxu0 0.0
    %384 = vmatpush1.xpose.msra.mxu0 0.0
    %385 = vmatprep.subr.mxu0 0.0
    %386 = vmatpush1.xpose.msra.mxu0 0.0
    %387 = vmatprep.subr.mxu0 0.0
    %388 = vmatpush1.xpose.msra.mxu0 0.0
    %389 = vmatprep.subr.mxu0 0.0
    %390 = vmatpush1.xpose.msra.mxu0 0.0
    %391 = vmatprep.subr.mxu0 0.0
    %392 = vmatpush1.xpose.msra.mxu0 0.0
    %393 = vmatprep.subr.mxu0 0.0
    %394 = vmatpush1.xpose.msra.mxu0 0.0
    %395 = vmatprep.subr.mxu0 0.0
    %396 = vmatpush1.xpose.msra.mxu0 0.0
    %397 = vmatprep.subr.mxu0 0.0
    %398 = vmatpush1.xpose.msra.mxu0 0.0
    %399 = vmatprep.subr.mxu0 0.0
    %400 = vmatpush1.xpose.msra.mxu0 0.0
    %401 = vmatprep.subr.mxu0 0.0
    %402 = vmatpush1.xpose.msra.mxu0 0.0
    %403 = vmatprep.subr.mxu0 0.0
    %404 = vmatpush1.xpose.msra.mxu0 0.0
    %405 = vmatprep.subr.mxu0 0.0
    %406 = vmatpush1.xpose.msra.mxu0 %v373
    %407 = vmatprep.subr.mxu0 0.0
    %408 = vmatpush2.xpose.msra.mxu0 0.0
    %409 = vmatprep.subr.mxu0 0.0
    %410 = vmatpush2.xpose.msra.mxu0 0.0
    %411 = vmatprep.subr.mxu0 0.0
    %412 = vmatpush2.xpose.msra.mxu0 0.0
    %413 = vmatprep.subr.mxu0 0.0
    %414 = vmatpush2.xpose.msra.mxu0 0.0
    %415 = vmatprep.subr.mxu0 0.0
    %416 = vmatpush2.xpose.msra.mxu0 0.0
    %417 = vmatprep.subr.mxu0 0.0
    %418 = vmatpush2.xpose.msra.mxu0 0.0
    %419 = vmatprep.subr.mxu0 0.0
    %420 = vmatpush2.xpose.msra.mxu0 0.0
    %421 = vmatprep.subr.mxu0 0.0
    %422 = vmatpush2.xpose.msra.mxu0 0.0
    %423 = vmatprep.subr.mxu0 0.0
    %424 = vmatpush2.xpose.msra.mxu0 0.0
    %425 = vmatprep.subr.mxu0 0.0
    %426 = vmatpush2.xpose.msra.mxu0 0.0
    %427 = vmatprep.subr.mxu0 0.0
    %428 = vmatpush2.xpose.msra.mxu0 0.0
    %429 = vmatprep.subr.mxu0 0.0
    %430 = vmatpush2.xpose.msra.mxu0 0.0
    %431 = vmatprep.subr.mxu0 0.0
    %432 = vmatpush2.xpose.msra.mxu0 0.0
    %433 = vmatprep.subr.mxu0 0.0
    %434 = vmatpush2.xpose.msra.mxu0 0.0
    %435 = vmatprep.subr.mxu0 0.0
    %436 = vmatpush2.xpose.msra.mxu0 0.0
    %437 = vmatprep.subr.mxu0 0.0
    %438 = vmatpush2.xpose.msra.mxu0 0.0
    %439 = vmatprep.mubr.f32.mxu0 0.0
    %440 = vmatmul.mubr.f32.gmra.mxu0 %v370
    %v441 = vpop.f32.mrf.mxu0
    %v442 = vadd.f32 %v367, %v441
    %v443 = vpop.f32.mrf.mxu0
    %444 = vdwg.mxu0
    %v445 = vsel %vm368, %v442, -inf
    %446 = vmax.xlane.f32.xlu0 %v445
    %v447 = vpop.xlane.xlu0 %446
    %v448 = vsub.f32 %v442, %v447
    %v449 = vmul.f32 %v448, 1.442695
    %v450 = vpow.pop %v449
    %v451 = vsel %vm368, %v450, 0.0
    %452 = vadd.xlane.f32.xlu0 %v451
    %v453 = vpop.xlane.xlu0 %452
    %v454 = vrcp.pop %v453
    %v455 = vmul.f32 %v450, %v454
    %v457 = vsel %vm368, %v455, 0
    %459 = vmatprep.subr.mxu0 0.0
    %460 = vmatpush1.msra.mxu0 0.0
    %461 = vmatprep.subr.mxu0 0.0
    %462 = vmatpush1.msra.mxu0 0.0
    %463 = vmatprep.subr.mxu0 0.0
    %464 = vmatpush1.msra.mxu0 0.0
    %465 = vmatprep.subr.mxu0 0.0
    %466 = vmatpush1.msra.mxu0 0.0
    %467 = vmatprep.subr.mxu0 0.0
    %468 = vmatpush1.msra.mxu0 0.0
    %469 = vmatprep.subr.mxu0 0.0
    %470 = vmatpush1.msra.mxu0 0.0
    %471 = vmatprep.subr.mxu0 0.0
    %472 = vmatpush1.msra.mxu0 0.0
    %473 = vmatprep.subr.mxu0 0.0
    %474 = vmatpush1.msra.mxu0 0.0
    %475 = vmatprep.subr.mxu0 0.0
    %476 = vmatpush1.msra.mxu0 0.0
    %477 = vmatprep.subr.mxu0 0.0
    %478 = vmatpush1.msra.mxu0 0.0
    %479 = vmatprep.subr.mxu0 0.0
    %480 = vmatpush1.msra.mxu0 0.0
    %481 = vmatprep.subr.mxu0 0.0
    %482 = vmatpush1.msra.mxu0 0.0
    %483 = vmatprep.subr.mxu0 0.0
    %484 = vmatpush1.msra.mxu0 0.0
    %485 = vmatprep.subr.mxu0 0.0
    %486 = vmatpush1.msra.mxu0 0.0
    %487 = vmatprep.subr.mxu0 0.0
    %488 = vmatpush1.msra.mxu0 0.0
    %489 = vmatprep.subr.mxu0 0.0
    %490 = vmatpush1.msra.mxu0 %v354
    %491 = vmatprep.subr.mxu0 0.0
    %492 = vmatpush2.msra.mxu0 0.0
    %493 = vmatprep.subr.mxu0 0.0
    %494 = vmatpush2.msra.mxu0 0.0
    %495 = vmatprep.subr.mxu0 0.0
    %496 = vmatpush2.msra.mxu0 0.0
    %497 = vmatprep.subr.mxu0 0.0
    %498 = vmatpush2.msra.mxu0 0.0
    %499 = vmatprep.subr.mxu0 0.0
    %500 = vmatpush2.msra.mxu0 0.0
    %501 = vmatprep.subr.mxu0 0.0
    %502 = vmatpush2.msra.mxu0 0.0
    %503 = vmatprep.subr.mxu0 0.0
    %504 = vmatpush2.msra.mxu0 0.0
    %505 = vmatprep.subr.mxu0 0.0
    %506 = vmatpush2.msra.mxu0 0.0
    %507 = vmatprep.subr.mxu0 0.0
    %508 = vmatpush2.msra.mxu0 0.0
    %509 = vmatprep.subr.mxu0 0.0
    %510 = vmatpush2.msra.mxu0 0.0
    %511 = vmatprep.subr.mxu0 0.0
    %512 = vmatpush2.msra.mxu0 0.0
    %513 = vmatprep.subr.mxu0 0.0
    %514 = vmatpush2.msra.mxu0 0.0
    %515 = vmatprep.subr.mxu0 0.0
    %516 = vmatpush2.msra.mxu0 0.0
    %517 = vmatprep.subr.mxu0 0.0
    %518 = vmatpush2.msra.mxu0 0.0
    %519 = vmatprep.subr.mxu0 0.0
    %520 = vmatpush2.msra.mxu0 0.0
    %521 = vmatprep.subr.mxu0 0.0
    %522 = vmatpush2.msra.mxu0 0.0
    %523 = vmatprep.mubr.f32.mxu0 0.0
    %524 = vmatmul.mubr.f32.gmra.mxu0 %v457
    %v525 = vpop.f32.mrf.mxu0
    %v526 = vadd.f32 0.0, %v525
    %v527 = vpop.f32.mrf.mxu0
    %528 = vdwg.mxu0
    %529 = vrot.lane.b32.xlu0 %v192, 120
    %v530 = vpop.permute.xlu0 %529
    %531 = vrot.lane.b32.xlu0 %v273, 120
    %v532 = vpop.permute.xlu0 %531
    %v533 = vsel %vm368, %v530, 0
    %v535 = vsel %vm368, %v532, 0
    %537 = vmatprep.subr.mxu0 0.0
    %538 = vmatpush1.xpose.msra.mxu0 0.0
    %539 = vmatprep.subr.mxu0 0.0
    %540 = vmatpush1.xpose.msra.mxu0 0.0
    %541 = vmatprep.subr.mxu0 0.0
    %542 = vmatpush1.xpose.msra.mxu0 0.0
    %543 = vmatprep.subr.mxu0 0.0
    %544 = vmatpush1.xpose.msra.mxu0 0.0
    %545 = vmatprep.subr.mxu0 0.0
    %546 = vmatpush1.xpose.msra.mxu0 0.0
    %547 = vmatprep.subr.mxu0 0.0
    %548 = vmatpush1.xpose.msra.mxu0 0.0
    %549 = vmatprep.subr.mxu0 0.0
    %550 = vmatpush1.xpose.msra.mxu0 0.0
    %551 = vmatprep.subr.mxu0 0.0
    %552 = vmatpush1.xpose.msra.mxu0 0.0
    %553 = vmatprep.subr.mxu0 0.0
    %554 = vmatpush1.xpose.msra.mxu0 0.0
    %555 = vmatprep.subr.mxu0 0.0
    %556 = vmatpush1.xpose.msra.mxu0 0.0
    %557 = vmatprep.subr.mxu0 0.0
    %558 = vmatpush1.xpose.msra.mxu0 0.0
    %559 = vmatprep.subr.mxu0 0.0
    %560 = vmatpush1.xpose.msra.mxu0 0.0
    %561 = vmatprep.subr.mxu0 0.0
    %562 = vmatpush1.xpose.msra.mxu0 0.0
    %563 = vmatprep.subr.mxu0 0.0
    %564 = vmatpush1.xpose.msra.mxu0 0.0
    %565 = vmatprep.subr.mxu0 0.0
    %566 = vmatpush1.xpose.msra.mxu0 0.0
    %567 = vmatprep.subr.mxu0 0.0
    %568 = vmatpush1.xpose.msra.mxu0 %v535
    %569 = vmatprep.subr.mxu0 0.0
    %570 = vmatpush2.xpose.msra.mxu0 0.0
    %571 = vmatprep.subr.mxu0 0.0
    %572 = vmatpush2.xpose.msra.mxu0 0.0
    %573 = vmatprep.subr.mxu0 0.0
    %574 = vmatpush2.xpose.msra.mxu0 0.0
    %575 = vmatprep.subr.mxu0 0.0
    %576 = vmatpush2.xpose.msra.mxu0 0.0
    %577 = vmatprep.subr.mxu0 0.0
    %578 = vmatpush2.xpose.msra.mxu0 0.0
    %579 = vmatprep.subr.mxu0 0.0
    %580 = vmatpush2.xpose.msra.mxu0 0.0
    %581 = vmatprep.subr.mxu0 0.0
    %582 = vmatpush2.xpose.msra.mxu0 0.0
    %583 = vmatprep.subr.mxu0 0.0
    %584 = vmatpush2.xpose.msra.mxu0 0.0
    %585 = vmatprep.subr.mxu0 0.0
    %586 = vmatpush2.xpose.msra.mxu0 0.0
    %587 = vmatprep.subr.mxu0 0.0
    %588 = vmatpush2.xpose.msra.mxu0 0.0
    %589 = vmatprep.subr.mxu0 0.0
    %590 = vmatpush2.xpose.msra.mxu0 0.0
    %591 = vmatprep.subr.mxu0 0.0
    %592 = vmatpush2.xpose.msra.mxu0 0.0
    %593 = vmatprep.subr.mxu0 0.0
    %594 = vmatpush2.xpose.msra.mxu0 0.0
    %595 = vmatprep.subr.mxu0 0.0
    %596 = vmatpush2.xpose.msra.mxu0 0.0
    %597 = vmatprep.subr.mxu0 0.0
    %598 = vmatpush2.xpose.msra.mxu0 0.0
    %599 = vmatprep.subr.mxu0 0.0
    %600 = vmatpush2.xpose.msra.mxu0 0.0
    %601 = vmatprep.mubr.f32.mxu0 0.0
    %602 = vmatmul.mubr.f32.gmra.mxu0 %v533
    %v603 = vpop.f32.mrf.mxu0
    %v604 = vadd.f32 %v367, %v603
    %v605 = vpop.f32.mrf.mxu0
    %606 = vdwg.mxu0
    %v607 = vsel %vm368, %v604, -inf
    %608 = vmax.xlane.f32.xlu0 %v607
    %v609 = vpop.xlane.xlu0 %608
    %v610 = vsub.f32 %v604, %v609
    %v611 = vmul.f32 %v610, 1.442695
    %v612 = vpow.pop %v611
    %v613 = vsel %vm368, %v612, 0.0
    %614 = vadd.xlane.f32.xlu0 %v613
    %v615 = vpop.xlane.xlu0 %614
    %v616 = vrcp.pop %v615
    %v617 = vmul.f32 %v612, %v616
    %619 = vrot.lane.b32.xlu0 %v354, 120
    %v620 = vpop.permute.xlu0 %619
    %v623 = vsel %vm368, %v617, 0
    %625 = vmatprep.subr.mxu0 0.0
    %626 = vmatpush1.msra.mxu0 0.0
    %627 = vmatprep.subr.mxu0 0.0
    %628 = vmatpush1.msra.mxu0 0.0
    %629 = vmatprep.subr.mxu0 0.0
    %630 = vmatpush1.msra.mxu0 0.0
    %631 = vmatprep.subr.mxu0 0.0
    %632 = vmatpush1.msra.mxu0 0.0
    %633 = vmatprep.subr.mxu0 0.0
    %634 = vmatpush1.msra.mxu0 0.0
    %635 = vmatprep.subr.mxu0 0.0
    %636 = vmatpush1.msra.mxu0 0.0
    %637 = vmatprep.subr.mxu0 0.0
    %638 = vmatpush1.msra.mxu0 0.0
    %639 = vmatprep.subr.mxu0 0.0
    %640 = vmatpush1.msra.mxu0 0.0
    %641 = vmatprep.subr.mxu0 0.0
    %642 = vmatpush1.msra.mxu0 0.0
    %643 = vmatprep.subr.mxu0 0.0
    %644 = vmatpush1.msra.mxu0 0.0
    %645 = vmatprep.subr.mxu0 0.0
    %646 = vmatpush1.msra.mxu0 0.0
    %647 = vmatprep.subr.mxu0 0.0
    %648 = vmatpush1.msra.mxu0 0.0
    %649 = vmatprep.subr.mxu0 0.0
    %650 = vmatpush1.msra.mxu0 0.0
    %651 = vmatprep.subr.mxu0 0.0
    %652 = vmatpush1.msra.mxu0 0.0
    %653 = vmatprep.subr.mxu0 0.0
    %654 = vmatpush1.msra.mxu0 0.0
    %655 = vmatprep.subr.mxu0 0.0
    %656 = vmatpush1.msra.mxu0 %v620
    %657 = vmatprep.subr.mxu0 0.0
    %658 = vmatpush2.msra.mxu0 0.0
    %659 = vmatprep.subr.mxu0 0.0
    %660 = vmatpush2.msra.mxu0 0.0
    %661 = vmatprep.subr.mxu0 0.0
    %662 = vmatpush2.msra.mxu0 0.0
    %663 = vmatprep.subr.mxu0 0.0
    %664 = vmatpush2.msra.mxu0 0.0
    %665 = vmatprep.subr.mxu0 0.0
    %666 = vmatpush2.msra.mxu0 0.0
    %667 = vmatprep.subr.mxu0 0.0
    %668 = vmatpush2.msra.mxu0 0.0
    %669 = vmatprep.subr.mxu0 0.0
    %670 = vmatpush2.msra.mxu0 0.0
    %671 = vmatprep.subr.mxu0 0.0
    %672 = vmatpush2.msra.mxu0 0.0
    %673 = vmatprep.subr.mxu0 0.0
    %674 = vmatpush2.msra.mxu0 0.0
    %675 = vmatprep.subr.mxu0 0.0
    %676 = vmatpush2.msra.mxu0 0.0
    %677 = vmatprep.subr.mxu0 0.0
    %678 = vmatpush2.msra.mxu0 0.0
    %679 = vmatprep.subr.mxu0 0.0
    %680 = vmatpush2.msra.mxu0 0.0
    %681 = vmatprep.subr.mxu0 0.0
    %682 = vmatpush2.msra.mxu0 0.0
    %683 = vmatprep.subr.mxu0 0.0
    %684 = vmatpush2.msra.mxu0 0.0
    %685 = vmatprep.subr.mxu0 0.0
    %686 = vmatpush2.msra.mxu0 0.0
    %687 = vmatprep.subr.mxu0 0.0
    %688 = vmatpush2.msra.mxu0 0.0
    %689 = vmatprep.mubr.f32.mxu0 0.0
    %690 = vmatmul.mubr.f32.gmra.mxu0 %v623
    %v691 = vpop.f32.mrf.mxu0
    %v692 = vadd.f32 0.0, %v691
    %v693 = vpop.f32.mrf.mxu0
    %694 = vdwg.mxu0
    %695 = vrot.lane.b32.xlu0 %v192, 112
    %v696 = vpop.permute.xlu0 %695
    %697 = vrot.lane.b32.xlu0 %v273, 112
    %v698 = vpop.permute.xlu0 %697
    %v699 = vsel %vm368, %v696, 0
    %v701 = vsel %vm368, %v698, 0
    %703 = vmatprep.subr.mxu0 0.0
    %704 = vmatpush1.xpose.msra.mxu0 0.0
    %705 = vmatprep.subr.mxu0 0.0
    %706 = vmatpush1.xpose.msra.mxu0 0.0
    %707 = vmatprep.subr.mxu0 0.0
    %708 = vmatpush1.xpose.msra.mxu0 0.0
    %709 = vmatprep.subr.mxu0 0.0
    %710 = vmatpush1.xpose.msra.mxu0 0.0
    %711 = vmatprep.subr.mxu0 0.0
    %712 = vmatpush1.xpose.msra.mxu0 0.0
    %713 = vmatprep.subr.mxu0 0.0
    %714 = vmatpush1.xpose.msra.mxu0 0.0
    %715 = vmatprep.subr.mxu0 0.0
    %716 = vmatpush1.xpose.msra.mxu0 0.0
    %717 = vmatprep.subr.mxu0 0.0
    %718 = vmatpush1.xpose.msra.mxu0 0.0
    %719 = vmatprep.subr.mxu0 0.0
    %720 = vmatpush1.xpose.msra.mxu0 0.0
    %721 = vmatprep.subr.mxu0 0.0
    %722 = vmatpush1.xpose.msra.mxu0 0.0
    %723 = vmatprep.subr.mxu0 0.0
    %724 = vmatpush1.xpose.msra.mxu0 0.0
    %725 = vmatprep.subr.mxu0 0.0
    %726 = vmatpush1.xpose.msra.mxu0 0.0
    %727 = vmatprep.subr.mxu0 0.0
    %728 = vmatpush1.xpose.msra.mxu0 0.0
    %729 = vmatprep.subr.mxu0 0.0
    %730 = vmatpush1.xpose.msra.mxu0 0.0
    %731 = vmatprep.subr.mxu0 0.0
    %732 = vmatpush1.xpose.msra.mxu0 0.0
    %733 = vmatprep.subr.mxu0 0.0
    %734 = vmatpush1.xpose.msra.mxu0 %v701
    %735 = vmatprep.subr.mxu0 0.0
    %736 = vmatpush2.xpose.msra.mxu0 0.0
    %737 = vmatprep.subr.mxu0 0.0
    %738 = vmatpush2.xpose.msra.mxu0 0.0
    %739 = vmatprep.subr.mxu0 0.0
    %740 = vmatpush2.xpose.msra.mxu0 0.0
    %741 = vmatprep.subr.mxu0 0.0
    %742 = vmatpush2.xpose.msra.mxu0 0.0
    %743 = vmatprep.subr.mxu0 0.0
    %744 = vmatpush2.xpose.msra.mxu0 0.0
    %745 = vmatprep.subr.mxu0 0.0
    %746 = vmatpush2.xpose.msra.mxu0 0.0
    %747 = vmatprep.subr.mxu0 0.0
    %748 = vmatpush2.xpose.msra.mxu0 0.0
    %749 = vmatprep.subr.mxu0 0.0
    %750 = vmatpush2.xpose.msra.mxu0 0.0
    %751 = vmatprep.subr.mxu0 0.0
    %752 = vmatpush2.xpose.msra.mxu0 0.0
    %753 = vmatprep.subr.mxu0 0.0
    %754 = vmatpush2.xpose.msra.mxu0 0.0
    %755 = vmatprep.subr.mxu0 0.0
    %756 = vmatpush2.xpose.msra.mxu0 0.0
    %757 = vmatprep.subr.mxu0 0.0
    %758 = vmatpush2.xpose.msra.mxu0 0.0
    %759 = vmatprep.subr.mxu0 0.0
    %760 = vmatpush2.xpose.msra.mxu0 0.0
    %761 = vmatprep.subr.mxu0 0.0
    %762 = vmatpush2.xpose.msra.mxu0 0.0
    %763 = vmatprep.subr.mxu0 0.0
    %764 = vmatpush2.xpose.msra.mxu0 0.0
    %765 = vmatprep.subr.mxu0 0.0
    %766 = vmatpush2.xpose.msra.mxu0 0.0
    %767 = vmatprep.mubr.f32.mxu0 0.0
    %768 = vmatmul.mubr.f32.gmra.mxu0 %v699
    %v769 = vpop.f32.mrf.mxu0
    %v770 = vadd.f32 %v367, %v769
    %v771 = vpop.f32.mrf.mxu0
    %772 = vdwg.mxu0
    %v773 = vsel %vm368, %v770, -inf
    %774 = vmax.xlane.f32.xlu0 %v773
    %v775 = vpop.xlane.xlu0 %774
    %v776 = vsub.f32 %v770, %v775
    %v777 = vmul.f32 %v776, 1.442695
    %v778 = vpow.pop %v777
    %v779 = vsel %vm368, %v778, 0.0
    %780 = vadd.xlane.f32.xlu0 %v779
    %v781 = vpop.xlane.xlu0 %780
    %v782 = vrcp.pop %v781
    %v783 = vmul.f32 %v778, %v782
    %784 = vrot.lane.b32.xlu0 %v354, 112
    %v785 = vpop.permute.xlu0 %784
    %v788 = vsel %vm368, %v783, 0
    %790 = vmatprep.subr.mxu0 0.0
    %791 = vmatpush1.msra.mxu0 0.0
    %792 = vmatprep.subr.mxu0 0.0
    %793 = vmatpush1.msra.mxu0 0.0
    %794 = vmatprep.subr.mxu0 0.0
    %795 = vmatpush1.msra.mxu0 0.0
    %796 = vmatprep.subr.mxu0 0.0
    %797 = vmatpush1.msra.mxu0 0.0
    %798 = vmatprep.subr.mxu0 0.0
    %799 = vmatpush1.msra.mxu0 0.0
    %800 = vmatprep.subr.mxu0 0.0
    %801 = vmatpush1.msra.mxu0 0.0
    %802 = vmatprep.subr.mxu0 0.0
    %803 = vmatpush1.msra.mxu0 0.0
    %804 = vmatprep.subr.mxu0 0.0
    %805 = vmatpush1.msra.mxu0 0.0
    %806 = vmatprep.subr.mxu0 0.0
    %807 = vmatpush1.msra.mxu0 0.0
    %808 = vmatprep.subr.mxu0 0.0
    %809 = vmatpush1.msra.mxu0 0.0
    %810 = vmatprep.subr.mxu0 0.0
    %811 = vmatpush1.msra.mxu0 0.0
    %812 = vmatprep.subr.mxu0 0.0
    %813 = vmatpush1.msra.mxu0 0.0
    %814 = vmatprep.subr.mxu0 0.0
    %815 = vmatpush1.msra.mxu0 0.0
    %816 = vmatprep.subr.mxu0 0.0
    %817 = vmatpush1.msra.mxu0 0.0
    %818 = vmatprep.subr.mxu0 0.0
    %819 = vmatpush1.msra.mxu0 0.0
    %820 = vmatprep.subr.mxu0 0.0
    %821 = vmatpush1.msra.mxu0 %v785
    %822 = vmatprep.subr.mxu0 0.0
    %823 = vmatpush2.msra.mxu0 0.0
    %824 = vmatprep.subr.mxu0 0.0
    %825 = vmatpush2.msra.mxu0 0.0
    %826 = vmatprep.subr.mxu0 0.0
    %827 = vmatpush2.msra.mxu0 0.0
    %828 = vmatprep.subr.mxu0 0.0
    %829 = vmatpush2.msra.mxu0 0.0
    %830 = vmatprep.subr.mxu0 0.0
    %831 = vmatpush2.msra.mxu0 0.0
    %832 = vmatprep.subr.mxu0 0.0
    %833 = vmatpush2.msra.mxu0 0.0
    %834 = vmatprep.subr.mxu0 0.0
    %835 = vmatpush2.msra.mxu0 0.0
    %836 = vmatprep.subr.mxu0 0.0
    %837 = vmatpush2.msra.mxu0 0.0
    %838 = vmatprep.subr.mxu0 0.0
    %839 = vmatpush2.msra.mxu0 0.0
    %840 = vmatprep.subr.mxu0 0.0
    %841 = vmatpush2.msra.mxu0 0.0
    %842 = vmatprep.subr.mxu0 0.0
    %843 = vmatpush2.msra.mxu0 0.0
    %844 = vmatprep.subr.mxu0 0.0
    %845 = vmatpush2.msra.mxu0 0.0
    %846 = vmatprep.subr.mxu0 0.0
    %847 = vmatpush2.msra.mxu0 0.0
    %848 = vmatprep.subr.mxu0 0.0
    %849 = vmatpush2.msra.mxu0 0.0
    %850 = vmatprep.subr.mxu0 0.0
    %851 = vmatpush2.msra.mxu0 0.0
    %852 = vmatprep.subr.mxu0 0.0
    %853 = vmatpush2.msra.mxu0 0.0
    %854 = vmatprep.mubr.f32.mxu0 0.0
    %855 = vmatmul.mubr.f32.gmra.mxu0 %v788
    %v856 = vpop.f32.mrf.mxu0
    %v857 = vadd.f32 0.0, %v856
    %v858 = vpop.f32.mrf.mxu0
    %859 = vdwg.mxu0
    %860 = vrot.lane.b32.xlu0 %v192, 104
    %v861 = vpop.permute.xlu0 %860
    %862 = vrot.lane.b32.xlu0 %v273, 104
    %v863 = vpop.permute.xlu0 %862
    %v864 = vsel %vm368, %v861, 0
    %v866 = vsel %vm368, %v863, 0
    %868 = vmatprep.subr.mxu0 0.0
    %869 = vmatpush1.xpose.msra.mxu0 0.0
    %870 = vmatprep.subr.mxu0 0.0
    %871 = vmatpush1.xpose.msra.mxu0 0.0
    %872 = vmatprep.subr.mxu0 0.0
    %873 = vmatpush1.xpose.msra.mxu0 0.0
    %874 = vmatprep.subr.mxu0 0.0
    %875 = vmatpush1.xpose.msra.mxu0 0.0
    %876 = vmatprep.subr.mxu0 0.0
    %877 = vmatpush1.xpose.msra.mxu0 0.0
    %878 = vmatprep.subr.mxu0 0.0
    %879 = vmatpush1.xpose.msra.mxu0 0.0
    %880 = vmatprep.subr.mxu0 0.0
    %881 = vmatpush1.xpose.msra.mxu0 0.0
    %882 = vmatprep.subr.mxu0 0.0
    %883 = vmatpush1.xpose.msra.mxu0 0.0
    %884 = vmatprep.subr.mxu0 0.0
    %885 = vmatpush1.xpose.msra.mxu0 0.0
    %886 = vmatprep.subr.mxu0 0.0
    %887 = vmatpush1.xpose.msra.mxu0 0.0
    %888 = vmatprep.subr.mxu0 0.0
    %889 = vmatpush1.xpose.msra.mxu0 0.0
    %890 = vmatprep.subr.mxu0 0.0
    %891 = vmatpush1.xpose.msra.mxu0 0.0
    %892 = vmatprep.subr.mxu0 0.0
    %893 = vmatpush1.xpose.msra.mxu0 0.0
    %894 = vmatprep.subr.mxu0 0.0
    %895 = vmatpush1.xpose.msra.mxu0 0.0
    %896 = vmatprep.subr.mxu0 0.0
    %897 = vmatpush1.xpose.msra.mxu0 0.0
    %898 = vmatprep.subr.mxu0 0.0
    %899 = vmatpush1.xpose.msra.mxu0 %v866
    %900 = vmatprep.subr.mxu0 0.0
    %901 = vmatpush2.xpose.msra.mxu0 0.0
    %902 = vmatprep.subr.mxu0 0.0
    %903 = vmatpush2.xpose.msra.mxu0 0.0
    %904 = vmatprep.subr.mxu0 0.0
    %905 = vmatpush2.xpose.msra.mxu0 0.0
    %906 = vmatprep.subr.mxu0 0.0
    %907 = vmatpush2.xpose.msra.mxu0 0.0
    %908 = vmatprep.subr.mxu0 0.0
    %909 = vmatpush2.xpose.msra.mxu0 0.0
    %910 = vmatprep.subr.mxu0 0.0
    %911 = vmatpush2.xpose.msra.mxu0 0.0
    %912 = vmatprep.subr.mxu0 0.0
    %913 = vmatpush2.xpose.msra.mxu0 0.0
    %914 = vmatprep.subr.mxu0 0.0
    %915 = vmatpush2.xpose.msra.mxu0 0.0
    %916 = vmatprep.subr.mxu0 0.0
    %917 = vmatpush2.xpose.msra.mxu0 0.0
    %918 = vmatprep.subr.mxu0 0.0
    %919 = vmatpush2.xpose.msra.mxu0 0.0
    %920 = vmatprep.subr.mxu0 0.0
    %921 = vmatpush2.xpose.msra.mxu0 0.0
    %922 = vmatprep.subr.mxu0 0.0
    %923 = vmatpush2.xpose.msra.mxu0 0.0
    %924 = vmatprep.subr.mxu0 0.0
    %925 = vmatpush2.xpose.msra.mxu0 0.0
    %926 = vmatprep.subr.mxu0 0.0
    %927 = vmatpush2.xpose.msra.mxu0 0.0
    %928 = vmatprep.subr.mxu0 0.0
    %929 = vmatpush2.xpose.msra.mxu0 0.0
    %930 = vmatprep.subr.mxu0 0.0
    %931 = vmatpush2.xpose.msra.mxu0 0.0
    %932 = vmatprep.mubr.f32.mxu0 0.0
    %933 = vmatmul.mubr.f32.gmra.mxu0 %v864
    %v934 = vpop.f32.mrf.mxu0
    %v935 = vadd.f32 %v367, %v934
    %v936 = vpop.f32.mrf.mxu0
    %937 = vdwg.mxu0
    %v938 = vsel %vm368, %v935, -inf
    %939 = vmax.xlane.f32.xlu0 %v938
    %v940 = vpop.xlane.xlu0 %939
    %v941 = vsub.f32 %v935, %v940
    %v942 = vmul.f32 %v941, 1.442695
    %v943 = vpow.pop %v942
    %v944 = vsel %vm368, %v943, 0.0
    %945 = vadd.xlane.f32.xlu0 %v944
    %v946 = vpop.xlane.xlu0 %945
    %v947 = vrcp.pop %v946
    %v948 = vmul.f32 %v943, %v947
    %949 = vrot.lane.b32.xlu0 %v354, 104
    %v950 = vpop.permute.xlu0 %949
    %v953 = vsel %vm368, %v948, 0
    %955 = vmatprep.subr.mxu0 0.0
    %956 = vmatpush1.msra.mxu0 0.0
    %957 = vmatprep.subr.mxu0 0.0
    %958 = vmatpush1.msra.mxu0 0.0
    %959 = vmatprep.subr.mxu0 0.0
    %960 = vmatpush1.msra.mxu0 0.0
    %961 = vmatprep.subr.mxu0 0.0
    %962 = vmatpush1.msra.mxu0 0.0
    %963 = vmatprep.subr.mxu0 0.0
    %964 = vmatpush1.msra.mxu0 0.0
    %965 = vmatprep.subr.mxu0 0.0
    %966 = vmatpush1.msra.mxu0 0.0
    %967 = vmatprep.subr.mxu0 0.0
    %968 = vmatpush1.msra.mxu0 0.0
    %969 = vmatprep.subr.mxu0 0.0
    %970 = vmatpush1.msra.mxu0 0.0
    %971 = vmatprep.subr.mxu0 0.0
    %972 = vmatpush1.msra.mxu0 0.0
    %973 = vmatprep.subr.mxu0 0.0
    %974 = vmatpush1.msra.mxu0 0.0
    %975 = vmatprep.subr.mxu0 0.0
    %976 = vmatpush1.msra.mxu0 0.0
    %977 = vmatprep.subr.mxu0 0.0
    %978 = vmatpush1.msra.mxu0 0.0
    %979 = vmatprep.subr.mxu0 0.0
    %980 = vmatpush1.msra.mxu0 0.0
    %981 = vmatprep.subr.mxu0 0.0
    %982 = vmatpush1.msra.mxu0 0.0
    %983 = vmatprep.subr.mxu0 0.0
    %984 = vmatpush1.msra.mxu0 0.0
    %985 = vmatprep.subr.mxu0 0.0
    %986 = vmatpush1.msra.mxu0 %v950
    %987 = vmatprep.subr.mxu0 0.0
    %988 = vmatpush2.msra.mxu0 0.0
    %989 = vmatprep.subr.mxu0 0.0
    %990 = vmatpush2.msra.mxu0 0.0
    %991 = vmatprep.subr.mxu0 0.0
    %992 = vmatpush2.msra.mxu0 0.0
    %993 = vmatprep.subr.mxu0 0.0
    %994 = vmatpush2.msra.mxu0 0.0
    %995 = vmatprep.subr.mxu0 0.0
    %996 = vmatpush2.msra.mxu0 0.0
    %997 = vmatprep.subr.mxu0 0.0
    %998 = vmatpush2.msra.mxu0 0.0
    %999 = vmatprep.subr.mxu0 0.0
    %1000 = vmatpush2.msra.mxu0 0.0
    %1001 = vmatprep.subr.mxu0 0.0
    %1002 = vmatpush2.msra.mxu0 0.0
    %1003 = vmatprep.subr.mxu0 0.0
    %1004 = vmatpush2.msra.mxu0 0.0
    %1005 = vmatprep.subr.mxu0 0.0
    %1006 = vmatpush2.msra.mxu0 0.0
    %1007 = vmatprep.subr.mxu0 0.0
    %1008 = vmatpush2.msra.mxu0 0.0
    %1009 = vmatprep.subr.mxu0 0.0
    %1010 = vmatpush2.msra.mxu0 0.0
    %1011 = vmatprep.subr.mxu0 0.0
    %1012 = vmatpush2.msra.mxu0 0.0
    %1013 = vmatprep.subr.mxu0 0.0
    %1014 = vmatpush2.msra.mxu0 0.0
    %1015 = vmatprep.subr.mxu0 0.0
    %1016 = vmatpush2.msra.mxu0 0.0
    %1017 = vmatprep.subr.mxu0 0.0
    %1018 = vmatpush2.msra.mxu0 0.0
    %1019 = vmatprep.mubr.f32.mxu0 0.0
    %1020 = vmatmul.mubr.f32.gmra.mxu0 %v953
    %v1021 = vpop.f32.mrf.mxu0
    %v1022 = vadd.f32 0.0, %v1021
    %v1023 = vpop.f32.mrf.mxu0
    %1024 = vdwg.mxu0
    %1026 = vrot.lane.b32.xlu0 %v692, 8
    %v1027 = vpop.permute.xlu0 %1026
    %1030 = vrot.lane.b32.xlu0 %v857, 16
    %v1031 = vpop.permute.xlu0 %1030
    %1034 = vrot.lane.b32.xlu0 %v1022, 24
    %v1035 = vpop.permute.xlu0 %1034
    %v1037 = vsel %vm368, %v526, %v1027
    %vm1038 = vcmask 130048
    %v1039 = vsel %vm1038, %v1037, %v1031
    %vm1040 = vcmask 195584
    %v1041 = vsel %vm1040, %v1039, %v1035
    %s1042 = sld [smem:[#allocation3 + $0x1]]
    %v1043 = vstv %s1042
    %vm1044 = vcmp.lt.s32.totalorder %v363, %v1043
    %v1045 = vsel %vm1044, 0.0, -1000000.0
    %v1047 = vsel %vm368, %v197, 0
    %v1050 = vsel %vm368, %v278, 0
    %1052 = vmatprep.subr.mxu0 0.0
    %1053 = vmatpush1.xpose.msra.mxu0 0.0
    %1054 = vmatprep.subr.mxu0 0.0
    %1055 = vmatpush1.xpose.msra.mxu0 0.0
    %1056 = vmatprep.subr.mxu0 0.0
    %1057 = vmatpush1.xpose.msra.mxu0 0.0
    %1058 = vmatprep.subr.mxu0 0.0
    %1059 = vmatpush1.xpose.msra.mxu0 0.0
    %1060 = vmatprep.subr.mxu0 0.0
    %1061 = vmatpush1.xpose.msra.mxu0 0.0
    %1062 = vmatprep.subr.mxu0 0.0
    %1063 = vmatpush1.xpose.msra.mxu0 0.0
    %1064 = vmatprep.subr.mxu0 0.0
    %1065 = vmatpush1.xpose.msra.mxu0 0.0
    %1066 = vmatprep.subr.mxu0 0.0
    %1067 = vmatpush1.xpose.msra.mxu0 0.0
    %1068 = vmatprep.subr.mxu0 0.0
    %1069 = vmatpush1.xpose.msra.mxu0 0.0
    %1070 = vmatprep.subr.mxu0 0.0
    %1071 = vmatpush1.xpose.msra.mxu0 0.0
    %1072 = vmatprep.subr.mxu0 0.0
    %1073 = vmatpush1.xpose.msra.mxu0 0.0
    %1074 = vmatprep.subr.mxu0 0.0
    %1075 = vmatpush1.xpose.msra.mxu0 0.0
    %1076 = vmatprep.subr.mxu0 0.0
    %1077 = vmatpush1.xpose.msra.mxu0 0.0
    %1078 = vmatprep.subr.mxu0 0.0
    %1079 = vmatpush1.xpose.msra.mxu0 0.0
    %1080 = vmatprep.subr.mxu0 0.0
    %1081 = vmatpush1.xpose.msra.mxu0 0.0
    %1082 = vmatprep.subr.mxu0 0.0
    %1083 = vmatpush1.xpose.msra.mxu0 %v1050
    %1084 = vmatprep.subr.mxu0 0.0
    %1085 = vmatpush2.xpose.msra.mxu0 0.0
    %1086 = vmatprep.subr.mxu0 0.0
    %1087 = vmatpush2.xpose.msra.mxu0 0.0
    %1088 = vmatprep.subr.mxu0 0.0
    %1089 = vmatpush2.xpose.msra.mxu0 0.0
    %1090 = vmatprep.subr.mxu0 0.0
    %1091 = vmatpush2.xpose.msra.mxu0 0.0
    %1092 = vmatprep.subr.mxu0 0.0
    %1093 = vmatpush2.xpose.msra.mxu0 0.0
    %1094 = vmatprep.subr.mxu0 0.0
    %1095 = vmatpush2.xpose.msra.mxu0 0.0
    %1096 = vmatprep.subr.mxu0 0.0
    %1097 = vmatpush2.xpose.msra.mxu0 0.0
    %1098 = vmatprep.subr.mxu0 0.0
    %1099 = vmatpush2.xpose.msra.mxu0 0.0
    %1100 = vmatprep.subr.mxu0 0.0
    %1101 = vmatpush2.xpose.msra.mxu0 0.0
    %1102 = vmatprep.subr.mxu0 0.0
    %1103 = vmatpush2.xpose.msra.mxu0 0.0
    %1104 = vmatprep.subr.mxu0 0.0
    %1105 = vmatpush2.xpose.msra.mxu0 0.0
    %1106 = vmatprep.subr.mxu0 0.0
    %1107 = vmatpush2.xpose.msra.mxu0 0.0
    %1108 = vmatprep.subr.mxu0 0.0
    %1109 = vmatpush2.xpose.msra.mxu0 0.0
    %1110 = vmatprep.subr.mxu0 0.0
    %1111 = vmatpush2.xpose.msra.mxu0 0.0
    %1112 = vmatprep.subr.mxu0 0.0
    %1113 = vmatpush2.xpose.msra.mxu0 0.0
    %1114 = vmatprep.subr.mxu0 0.0
    %1115 = vmatpush2.xpose.msra.mxu0 0.0
    %1116 = vmatprep.mubr.f32.mxu0 0.0
    %1117 = vmatmul.mubr.f32.gmra.mxu0 %v1047
    %v1118 = vpop.f32.mrf.mxu0
    %v1119 = vadd.f32 %v1045, %v1118
    %v1120 = vpop.f32.mrf.mxu0
    %1121 = vdwg.mxu0
    %v1122 = vsel %vm368, %v1119, -inf
    %1123 = vmax.xlane.f32.xlu0 %v1122
    %v1124 = vpop.xlane.xlu0 %1123
    %v1125 = vsub.f32 %v1119, %v1124
    %v1126 = vmul.f32 %v1125, 1.442695
    %v1127 = vpow.pop %v1126
    %v1128 = vsel %vm368, %v1127, 0.0
    %1129 = vadd.xlane.f32.xlu0 %v1128
    %v1130 = vpop.xlane.xlu0 %1129
    %v1131 = vrcp.pop %v1130
    %v1132 = vmul.f32 %v1127, %v1131
    %v1134 = vsel %vm368, %v1132, 0
    %1136 = vmatprep.subr.mxu0 0.0
    %1137 = vmatpush1.msra.mxu0 0.0
    %1138 = vmatprep.subr.mxu0 0.0
    %1139 = vmatpush1.msra.mxu0 0.0
    %1140 = vmatprep.subr.mxu0 0.0
    %1141 = vmatpush1.msra.mxu0 0.0
    %1142 = vmatprep.subr.mxu0 0.0
    %1143 = vmatpush1.msra.mxu0 0.0
    %1144 = vmatprep.subr.mxu0 0.0
    %1145 = vmatpush1.msra.mxu0 0.0
    %1146 = vmatprep.subr.mxu0 0.0
    %1147 = vmatpush1.msra.mxu0 0.0
    %1148 = vmatprep.subr.mxu0 0.0
    %1149 = vmatpush1.msra.mxu0 0.0
    %1150 = vmatprep.subr.mxu0 0.0
    %1151 = vmatpush1.msra.mxu0 0.0
    %1152 = vmatprep.subr.mxu0 0.0
    %1153 = vmatpush1.msra.mxu0 0.0
    %1154 = vmatprep.subr.mxu0 0.0
    %1155 = vmatpush1.msra.mxu0 0.0
    %1156 = vmatprep.subr.mxu0 0.0
    %1157 = vmatpush1.msra.mxu0 0.0
    %1158 = vmatprep.subr.mxu0 0.0
    %1159 = vmatpush1.msra.mxu0 0.0
    %1160 = vmatprep.subr.mxu0 0.0
    %1161 = vmatpush1.msra.mxu0 0.0
    %1162 = vmatprep.subr.mxu0 0.0
    %1163 = vmatpush1.msra.mxu0 0.0
    %1164 = vmatprep.subr.mxu0 0.0
    %1165 = vmatpush1.msra.mxu0 0.0
    %1166 = vmatprep.subr.mxu0 0.0
    %1167 = vmatpush1.msra.mxu0 %v359
    %1168 = vmatprep.subr.mxu0 0.0
    %1169 = vmatpush2.msra.mxu0 0.0
    %1170 = vmatprep.subr.mxu0 0.0
    %1171 = vmatpush2.msra.mxu0 0.0
    %1172 = vmatprep.subr.mxu0 0.0
    %1173 = vmatpush2.msra.mxu0 0.0
    %1174 = vmatprep.subr.mxu0 0.0
    %1175 = vmatpush2.msra.mxu0 0.0
    %1176 = vmatprep.subr.mxu0 0.0
    %1177 = vmatpush2.msra.mxu0 0.0
    %1178 = vmatprep.subr.mxu0 0.0
    %1179 = vmatpush2.msra.mxu0 0.0
    %1180 = vmatprep.subr.mxu0 0.0
    %1181 = vmatpush2.msra.mxu0 0.0
    %1182 = vmatprep.subr.mxu0 0.0
    %1183 = vmatpush2.msra.mxu0 0.0
    %1184 = vmatprep.subr.mxu0 0.0
    %1185 = vmatpush2.msra.mxu0 0.0
    %1186 = vmatprep.subr.mxu0 0.0
    %1187 = vmatpush2.msra.mxu0 0.0
    %1188 = vmatprep.subr.mxu0 0.0
    %1189 = vmatpush2.msra.mxu0 0.0
    %1190 = vmatprep.subr.mxu0 0.0
    %1191 = vmatpush2.msra.mxu0 0.0
    %1192 = vmatprep.subr.mxu0 0.0
    %1193 = vmatpush2.msra.mxu0 0.0
    %1194 = vmatprep.subr.mxu0 0.0
    %1195 = vmatpush2.msra.mxu0 0.0
    %1196 = vmatprep.subr.mxu0 0.0
    %1197 = vmatpush2.msra.mxu0 0.0
    %1198 = vmatprep.subr.mxu0 0.0
    %1199 = vmatpush2.msra.mxu0 0.0
    %1200 = vmatprep.mubr.f32.mxu0 0.0
    %1201 = vmatmul.mubr.f32.gmra.mxu0 %v1134
    %v1202 = vpop.f32.mrf.mxu0
    %v1203 = vadd.f32 0.0, %v1202
    %v1204 = vpop.f32.mrf.mxu0
    %1205 = vdwg.mxu0
    %1206 = vrot.lane.b32.xlu0 %v197, 120
    %v1207 = vpop.permute.xlu0 %1206
    %1208 = vrot.lane.b32.xlu0 %v278, 120
    %v1209 = vpop.permute.xlu0 %1208
    %v1210 = vsel %vm368, %v1207, 0
    %v1212 = vsel %vm368, %v1209, 0
    %1214 = vmatprep.subr.mxu0 0.0
    %1215 = vmatpush1.xpose.msra.mxu0 0.0
    %1216 = vmatprep.subr.mxu0 0.0
    %1217 = vmatpush1.xpose.msra.mxu0 0.0
    %1218 = vmatprep.subr.mxu0 0.0
    %1219 = vmatpush1.xpose.msra.mxu0 0.0
    %1220 = vmatprep.subr.mxu0 0.0
    %1221 = vmatpush1.xpose.msra.mxu0 0.0
    %1222 = vmatprep.subr.mxu0 0.0
    %1223 = vmatpush1.xpose.msra.mxu0 0.0
    %1224 = vmatprep.subr.mxu0 0.0
    %1225 = vmatpush1.xpose.msra.mxu0 0.0
    %1226 = vmatprep.subr.mxu0 0.0
    %1227 = vmatpush1.xpose.msra.mxu0 0.0
    %1228 = vmatprep.subr.mxu0 0.0
    %1229 = vmatpush1.xpose.msra.mxu0 0.0
    %1230 = vmatprep.subr.mxu0 0.0
    %1231 = vmatpush1.xpose.msra.mxu0 0.0
    %1232 = vmatprep.subr.mxu0 0.0
    %1233 = vmatpush1.xpose.msra.mxu0 0.0
    %1234 = vmatprep.subr.mxu0 0.0
    %1235 = vmatpush1.xpose.msra.mxu0 0.0
    %1236 = vmatprep.subr.mxu0 0.0
    %1237 = vmatpush1.xpose.msra.mxu0 0.0
    %1238 = vmatprep.subr.mxu0 0.0
    %1239 = vmatpush1.xpose.msra.mxu0 0.0
    %1240 = vmatprep.subr.mxu0 0.0
    %1241 = vmatpush1.xpose.msra.mxu0 0.0
    %1242 = vmatprep.subr.mxu0 0.0
    %1243 = vmatpush1.xpose.msra.mxu0 0.0
    %1244 = vmatprep.subr.mxu0 0.0
    %1245 = vmatpush1.xpose.msra.mxu0 %v1212
    %1246 = vmatprep.subr.mxu0 0.0
    %1247 = vmatpush2.xpose.msra.mxu0 0.0
    %1248 = vmatprep.subr.mxu0 0.0
    %1249 = vmatpush2.xpose.msra.mxu0 0.0
    %1250 = vmatprep.subr.mxu0 0.0
    %1251 = vmatpush2.xpose.msra.mxu0 0.0
    %1252 = vmatprep.subr.mxu0 0.0
    %1253 = vmatpush2.xpose.msra.mxu0 0.0
    %1254 = vmatprep.subr.mxu0 0.0
    %1255 = vmatpush2.xpose.msra.mxu0 0.0
    %1256 = vmatprep.subr.mxu0 0.0
    %1257 = vmatpush2.xpose.msra.mxu0 0.0
    %1258 = vmatprep.subr.mxu0 0.0
    %1259 = vmatpush2.xpose.msra.mxu0 0.0
    %1260 = vmatprep.subr.mxu0 0.0
    %1261 = vmatpush2.xpose.msra.mxu0 0.0
    %1262 = vmatprep.subr.mxu0 0.0
    %1263 = vmatpush2.xpose.msra.mxu0 0.0
    %1264 = vmatprep.subr.mxu0 0.0
    %1265 = vmatpush2.xpose.msra.mxu0 0.0
    %1266 = vmatprep.subr.mxu0 0.0
    %1267 = vmatpush2.xpose.msra.mxu0 0.0
    %1268 = vmatprep.subr.mxu0 0.0
    %1269 = vmatpush2.xpose.msra.mxu0 0.0
    %1270 = vmatprep.subr.mxu0 0.0
    %1271 = vmatpush2.xpose.msra.mxu0 0.0
    %1272 = vmatprep.subr.mxu0 0.0
    %1273 = vmatpush2.xpose.msra.mxu0 0.0
    %1274 = vmatprep.subr.mxu0 0.0
    %1275 = vmatpush2.xpose.msra.mxu0 0.0
    %1276 = vmatprep.subr.mxu0 0.0
    %1277 = vmatpush2.xpose.msra.mxu0 0.0
    %1278 = vmatprep.mubr.f32.mxu0 0.0
    %1279 = vmatmul.mubr.f32.gmra.mxu0 %v1210
    %v1280 = vpop.f32.mrf.mxu0
    %v1281 = vadd.f32 %v1045, %v1280
    %v1282 = vpop.f32.mrf.mxu0
    %1283 = vdwg.mxu0
    %v1284 = vsel %vm368, %v1281, -inf
    %1285 = vmax.xlane.f32.xlu0 %v1284
    %v1286 = vpop.xlane.xlu0 %1285
    %v1287 = vsub.f32 %v1281, %v1286
    %v1288 = vmul.f32 %v1287, 1.442695
    %v1289 = vpow.pop %v1288
    %v1290 = vsel %vm368, %v1289, 0.0
    %1291 = vadd.xlane.f32.xlu0 %v1290
    %v1292 = vpop.xlane.xlu0 %1291
    %v1293 = vrcp.pop %v1292
    %v1294 = vmul.f32 %v1289, %v1293
    %1296 = vrot.lane.b32.xlu0 %v359, 120
    %v1297 = vpop.permute.xlu0 %1296
    %v1300 = vsel %vm368, %v1294, 0
    %1302 = vmatprep.subr.mxu0 0.0
    %1303 = vmatpush1.msra.mxu0 0.0
    %1304 = vmatprep.subr.mxu0 0.0
    %1305 = vmatpush1.msra.mxu0 0.0
    %1306 = vmatprep.subr.mxu0 0.0
    %1307 = vmatpush1.msra.mxu0 0.0
    %1308 = vmatprep.subr.mxu0 0.0
    %1309 = vmatpush1.msra.mxu0 0.0
    %1310 = vmatprep.subr.mxu0 0.0
    %1311 = vmatpush1.msra.mxu0 0.0
    %1312 = vmatprep.subr.mxu0 0.0
    %1313 = vmatpush1.msra.mxu0 0.0
    %1314 = vmatprep.subr.mxu0 0.0
    %1315 = vmatpush1.msra.mxu0 0.0
    %1316 = vmatprep.subr.mxu0 0.0
    %1317 = vmatpush1.msra.mxu0 0.0
    %1318 = vmatprep.subr.mxu0 0.0
    %1319 = vmatpush1.msra.mxu0 0.0
    %1320 = vmatprep.subr.mxu0 0.0
    %1321 = vmatpush1.msra.mxu0 0.0
    %1322 = vmatprep.subr.mxu0 0.0
    %1323 = vmatpush1.msra.mxu0 0.0
    %1324 = vmatprep.subr.mxu0 0.0
    %1325 = vmatpush1.msra.mxu0 0.0
    %1326 = vmatprep.subr.mxu0 0.0
    %1327 = vmatpush1.msra.mxu0 0.0
    %1328 = vmatprep.subr.mxu0 0.0
    %1329 = vmatpush1.msra.mxu0 0.0
    %1330 = vmatprep.subr.mxu0 0.0
    %1331 = vmatpush1.msra.mxu0 0.0
    %1332 = vmatprep.subr.mxu0 0.0
    %1333 = vmatpush1.msra.mxu0 %v1297
    %1334 = vmatprep.subr.mxu0 0.0
    %1335 = vmatpush2.msra.mxu0 0.0
    %1336 = vmatprep.subr.mxu0 0.0
    %1337 = vmatpush2.msra.mxu0 0.0
    %1338 = vmatprep.subr.mxu0 0.0
    %1339 = vmatpush2.msra.mxu0 0.0
    %1340 = vmatprep.subr.mxu0 0.0
    %1341 = vmatpush2.msra.mxu0 0.0
    %1342 = vmatprep.subr.mxu0 0.0
    %1343 = vmatpush2.msra.mxu0 0.0
    %1344 = vmatprep.subr.mxu0 0.0
    %1345 = vmatpush2.msra.mxu0 0.0
    %1346 = vmatprep.subr.mxu0 0.0
    %1347 = vmatpush2.msra.mxu0 0.0
    %1348 = vmatprep.subr.mxu0 0.0
    %1349 = vmatpush2.msra.mxu0 0.0
    %1350 = vmatprep.subr.mxu0 0.0
    %1351 = vmatpush2.msra.mxu0 0.0
    %1352 = vmatprep.subr.mxu0 0.0
    %1353 = vmatpush2.msra.mxu0 0.0
    %1354 = vmatprep.subr.mxu0 0.0
    %1355 = vmatpush2.msra.mxu0 0.0
    %1356 = vmatprep.subr.mxu0 0.0
    %1357 = vmatpush2.msra.mxu0 0.0
    %1358 = vmatprep.subr.mxu0 0.0
    %1359 = vmatpush2.msra.mxu0 0.0
    %1360 = vmatprep.subr.mxu0 0.0
    %1361 = vmatpush2.msra.mxu0 0.0
    %1362 = vmatprep.subr.mxu0 0.0
    %1363 = vmatpush2.msra.mxu0 0.0
    %1364 = vmatprep.subr.mxu0 0.0
    %1365 = vmatpush2.msra.mxu0 0.0
    %1366 = vmatprep.mubr.f32.mxu0 0.0
    %1367 = vmatmul.mubr.f32.gmra.mxu0 %v1300
    %v1368 = vpop.f32.mrf.mxu0
    %v1369 = vadd.f32 0.0, %v1368
    %v1370 = vpop.f32.mrf.mxu0
    %1371 = vdwg.mxu0
    %1372 = vrot.lane.b32.xlu0 %v197, 112
    %v1373 = vpop.permute.xlu0 %1372
    %1374 = vrot.lane.b32.xlu0 %v278, 112
    %v1375 = vpop.permute.xlu0 %1374
    %v1376 = vsel %vm368, %v1373, 0
    %v1378 = vsel %vm368, %v1375, 0
    %1380 = vmatprep.subr.mxu0 0.0
    %1381 = vmatpush1.xpose.msra.mxu0 0.0
    %1382 = vmatprep.subr.mxu0 0.0
    %1383 = vmatpush1.xpose.msra.mxu0 0.0
    %1384 = vmatprep.subr.mxu0 0.0
    %1385 = vmatpush1.xpose.msra.mxu0 0.0
    %1386 = vmatprep.subr.mxu0 0.0
    %1387 = vmatpush1.xpose.msra.mxu0 0.0
    %1388 = vmatprep.subr.mxu0 0.0
    %1389 = vmatpush1.xpose.msra.mxu0 0.0
    %1390 = vmatprep.subr.mxu0 0.0
    %1391 = vmatpush1.xpose.msra.mxu0 0.0
    %1392 = vmatprep.subr.mxu0 0.0
    %1393 = vmatpush1.xpose.msra.mxu0 0.0
    %1394 = vmatprep.subr.mxu0 0.0
    %1395 = vmatpush1.xpose.msra.mxu0 0.0
    %1396 = vmatprep.subr.mxu0 0.0
    %1397 = vmatpush1.xpose.msra.mxu0 0.0
    %1398 = vmatprep.subr.mxu0 0.0
    %1399 = vmatpush1.xpose.msra.mxu0 0.0
    %1400 = vmatprep.subr.mxu0 0.0
    %1401 = vmatpush1.xpose.msra.mxu0 0.0
    %1402 = vmatprep.subr.mxu0 0.0
    %1403 = vmatpush1.xpose.msra.mxu0 0.0
    %1404 = vmatprep.subr.mxu0 0.0
    %1405 = vmatpush1.xpose.msra.mxu0 0.0
    %1406 = vmatprep.subr.mxu0 0.0
    %1407 = vmatpush1.xpose.msra.mxu0 0.0
    %1408 = vmatprep.subr.mxu0 0.0
    %1409 = vmatpush1.xpose.msra.mxu0 0.0
    %1410 = vmatprep.subr.mxu0 0.0
    %1411 = vmatpush1.xpose.msra.mxu0 %v1378
    %1412 = vmatprep.subr.mxu0 0.0
    %1413 = vmatpush2.xpose.msra.mxu0 0.0
    %1414 = vmatprep.subr.mxu0 0.0
    %1415 = vmatpush2.xpose.msra.mxu0 0.0
    %1416 = vmatprep.subr.mxu0 0.0
    %1417 = vmatpush2.xpose.msra.mxu0 0.0
    %1418 = vmatprep.subr.mxu0 0.0
    %1419 = vmatpush2.xpose.msra.mxu0 0.0
    %1420 = vmatprep.subr.mxu0 0.0
    %1421 = vmatpush2.xpose.msra.mxu0 0.0
    %1422 = vmatprep.subr.mxu0 0.0
    %1423 = vmatpush2.xpose.msra.mxu0 0.0
    %1424 = vmatprep.subr.mxu0 0.0
    %1425 = vmatpush2.xpose.msra.mxu0 0.0
    %1426 = vmatprep.subr.mxu0 0.0
    %1427 = vmatpush2.xpose.msra.mxu0 0.0
    %1428 = vmatprep.subr.mxu0 0.0
    %1429 = vmatpush2.xpose.msra.mxu0 0.0
    %1430 = vmatprep.subr.mxu0 0.0
    %1431 = vmatpush2.xpose.msra.mxu0 0.0
    %1432 = vmatprep.subr.mxu0 0.0
    %1433 = vmatpush2.xpose.msra.mxu0 0.0
    %1434 = vmatprep.subr.mxu0 0.0
    %1435 = vmatpush2.xpose.msra.mxu0 0.0
    %1436 = vmatprep.subr.mxu0 0.0
    %1437 = vmatpush2.xpose.msra.mxu0 0.0
    %1438 = vmatprep.subr.mxu0 0.0
    %1439 = vmatpush2.xpose.msra.mxu0 0.0
    %1440 = vmatprep.subr.mxu0 0.0
    %1441 = vmatpush2.xpose.msra.mxu0 0.0
    %1442 = vmatprep.subr.mxu0 0.0
    %1443 = vmatpush2.xpose.msra.mxu0 0.0
    %1444 = vmatprep.mubr.f32.mxu0 0.0
    %1445 = vmatmul.mubr.f32.gmra.mxu0 %v1376
    %v1446 = vpop.f32.mrf.mxu0
    %v1447 = vadd.f32 %v1045, %v1446
    %v1448 = vpop.f32.mrf.mxu0
    %1449 = vdwg.mxu0
    %v1450 = vsel %vm368, %v1447, -inf
    %1451 = vmax.xlane.f32.xlu0 %v1450
    %v1452 = vpop.xlane.xlu0 %1451
    %v1453 = vsub.f32 %v1447, %v1452
    %v1454 = vmul.f32 %v1453, 1.442695
    %v1455 = vpow.pop %v1454
    %v1456 = vsel %vm368, %v1455, 0.0
    %1457 = vadd.xlane.f32.xlu0 %v1456
    %v1458 = vpop.xlane.xlu0 %1457
    %v1459 = vrcp.pop %v1458
    %v1460 = vmul.f32 %v1455, %v1459
    %1461 = vrot.lane.b32.xlu0 %v359, 112
    %v1462 = vpop.permute.xlu0 %1461
    %v1465 = vsel %vm368, %v1460, 0
    %1467 = vmatprep.subr.mxu0 0.0
    %1468 = vmatpush1.msra.mxu0 0.0
    %1469 = vmatprep.subr.mxu0 0.0
    %1470 = vmatpush1.msra.mxu0 0.0
    %1471 = vmatprep.subr.mxu0 0.0
    %1472 = vmatpush1.msra.mxu0 0.0
    %1473 = vmatprep.subr.mxu0 0.0
    %1474 = vmatpush1.msra.mxu0 0.0
    %1475 = vmatprep.subr.mxu0 0.0
    %1476 = vmatpush1.msra.mxu0 0.0
    %1477 = vmatprep.subr.mxu0 0.0
    %1478 = vmatpush1.msra.mxu0 0.0
    %1479 = vmatprep.subr.mxu0 0.0
    %1480 = vmatpush1.msra.mxu0 0.0
    %1481 = vmatprep.subr.mxu0 0.0
    %1482 = vmatpush1.msra.mxu0 0.0
    %1483 = vmatprep.subr.mxu0 0.0
    %1484 = vmatpush1.msra.mxu0 0.0
    %1485 = vmatprep.subr.mxu0 0.0
    %1486 = vmatpush1.msra.mxu0 0.0
    %1487 = vmatprep.subr.mxu0 0.0
    %1488 = vmatpush1.msra.mxu0 0.0
    %1489 = vmatprep.subr.mxu0 0.0
    %1490 = vmatpush1.msra.mxu0 0.0
    %1491 = vmatprep.subr.mxu0 0.0
    %1492 = vmatpush1.msra.mxu0 0.0
    %1493 = vmatprep.subr.mxu0 0.0
    %1494 = vmatpush1.msra.mxu0 0.0
    %1495 = vmatprep.subr.mxu0 0.0
    %1496 = vmatpush1.msra.mxu0 0.0
    %1497 = vmatprep.subr.mxu0 0.0
    %1498 = vmatpush1.msra.mxu0 %v1462
    %1499 = vmatprep.subr.mxu0 0.0
    %1500 = vmatpush2.msra.mxu0 0.0
    %1501 = vmatprep.subr.mxu0 0.0
    %1502 = vmatpush2.msra.mxu0 0.0
    %1503 = vmatprep.subr.mxu0 0.0
    %1504 = vmatpush2.msra.mxu0 0.0
    %1505 = vmatprep.subr.mxu0 0.0
    %1506 = vmatpush2.msra.mxu0 0.0
    %1507 = vmatprep.subr.mxu0 0.0
    %1508 = vmatpush2.msra.mxu0 0.0
    %1509 = vmatprep.subr.mxu0 0.0
    %1510 = vmatpush2.msra.mxu0 0.0
    %1511 = vmatprep.subr.mxu0 0.0
    %1512 = vmatpush2.msra.mxu0 0.0
    %1513 = vmatprep.subr.mxu0 0.0
    %1514 = vmatpush2.msra.mxu0 0.0
    %1515 = vmatprep.subr.mxu0 0.0
    %1516 = vmatpush2.msra.mxu0 0.0
    %1517 = vmatprep.subr.mxu0 0.0
    %1518 = vmatpush2.msra.mxu0 0.0
    %1519 = vmatprep.subr.mxu0 0.0
    %1520 = vmatpush2.msra.mxu0 0.0
    %1521 = vmatprep.subr.mxu0 0.0
    %1522 = vmatpush2.msra.mxu0 0.0
    %1523 = vmatprep.subr.mxu0 0.0
    %1524 = vmatpush2.msra.mxu0 0.0
    %1525 = vmatprep.subr.mxu0 0.0
    %1526 = vmatpush2.msra.mxu0 0.0
    %1527 = vmatprep.subr.mxu0 0.0
    %1528 = vmatpush2.msra.mxu0 0.0
    %1529 = vmatprep.subr.mxu0 0.0
    %1530 = vmatpush2.msra.mxu0 0.0
    %1531 = vmatprep.mubr.f32.mxu0 0.0
    %1532 = vmatmul.mubr.f32.gmra.mxu0 %v1465
    %v1533 = vpop.f32.mrf.mxu0
    %v1534 = vadd.f32 0.0, %v1533
    %v1535 = vpop.f32.mrf.mxu0
    %1536 = vdwg.mxu0
    %1537 = vrot.lane.b32.xlu0 %v197, 104
    %v1538 = vpop.permute.xlu0 %1537
    %1539 = vrot.lane.b32.xlu0 %v278, 104
    %v1540 = vpop.permute.xlu0 %1539
    %v1541 = vsel %vm368, %v1538, 0
    %v1543 = vsel %vm368, %v1540, 0
    %1545 = vmatprep.subr.mxu0 0.0
    %1546 = vmatpush1.xpose.msra.mxu0 0.0
    %1547 = vmatprep.subr.mxu0 0.0
    %1548 = vmatpush1.xpose.msra.mxu0 0.0
    %1549 = vmatprep.subr.mxu0 0.0
    %1550 = vmatpush1.xpose.msra.mxu0 0.0
    %1551 = vmatprep.subr.mxu0 0.0
    %1552 = vmatpush1.xpose.msra.mxu0 0.0
    %1553 = vmatprep.subr.mxu0 0.0
    %1554 = vmatpush1.xpose.msra.mxu0 0.0
    %1555 = vmatprep.subr.mxu0 0.0
    %1556 = vmatpush1.xpose.msra.mxu0 0.0
    %1557 = vmatprep.subr.mxu0 0.0
    %1558 = vmatpush1.xpose.msra.mxu0 0.0
    %1559 = vmatprep.subr.mxu0 0.0
    %1560 = vmatpush1.xpose.msra.mxu0 0.0
    %1561 = vmatprep.subr.mxu0 0.0
    %1562 = vmatpush1.xpose.msra.mxu0 0.0
    %1563 = vmatprep.subr.mxu0 0.0
    %1564 = vmatpush1.xpose.msra.mxu0 0.0
    %1565 = vmatprep.subr.mxu0 0.0
    %1566 = vmatpush1.xpose.msra.mxu0 0.0
    %1567 = vmatprep.subr.mxu0 0.0
    %1568 = vmatpush1.xpose.msra.mxu0 0.0
    %1569 = vmatprep.subr.mxu0 0.0
    %1570 = vmatpush1.xpose.msra.mxu0 0.0
    %1571 = vmatprep.subr.mxu0 0.0
    %1572 = vmatpush1.xpose.msra.mxu0 0.0
    %1573 = vmatprep.subr.mxu0 0.0
    %1574 = vmatpush1.xpose.msra.mxu0 0.0
    %1575 = vmatprep.subr.mxu0 0.0
    %1576 = vmatpush1.xpose.msra.mxu0 %v1543
    %1577 = vmatprep.subr.mxu0 0.0
    %1578 = vmatpush2.xpose.msra.mxu0 0.0
    %1579 = vmatprep.subr.mxu0 0.0
    %1580 = vmatpush2.xpose.msra.mxu0 0.0
    %1581 = vmatprep.subr.mxu0 0.0
    %1582 = vmatpush2.xpose.msra.mxu0 0.0
    %1583 = vmatprep.subr.mxu0 0.0
    %1584 = vmatpush2.xpose.msra.mxu0 0.0
    %1585 = vmatprep.subr.mxu0 0.0
    %1586 = vmatpush2.xpose.msra.mxu0 0.0
    %1587 = vmatprep.subr.mxu0 0.0
    %1588 = vmatpush2.xpose.msra.mxu0 0.0
    %1589 = vmatprep.subr.mxu0 0.0
    %1590 = vmatpush2.xpose.msra.mxu0 0.0
    %1591 = vmatprep.subr.mxu0 0.0
    %1592 = vmatpush2.xpose.msra.mxu0 0.0
    %1593 = vmatprep.subr.mxu0 0.0
    %1594 = vmatpush2.xpose.msra.mxu0 0.0
    %1595 = vmatprep.subr.mxu0 0.0
    %1596 = vmatpush2.xpose.msra.mxu0 0.0
    %1597 = vmatprep.subr.mxu0 0.0
    %1598 = vmatpush2.xpose.msra.mxu0 0.0
    %1599 = vmatprep.subr.mxu0 0.0
    %1600 = vmatpush2.xpose.msra.mxu0 0.0
    %1601 = vmatprep.subr.mxu0 0.0
    %1602 = vmatpush2.xpose.msra.mxu0 0.0
    %1603 = vmatprep.subr.mxu0 0.0
    %1604 = vmatpush2.xpose.msra.mxu0 0.0
    %1605 = vmatprep.subr.mxu0 0.0
    %1606 = vmatpush2.xpose.msra.mxu0 0.0
    %1607 = vmatprep.subr.mxu0 0.0
    %1608 = vmatpush2.xpose.msra.mxu0 0.0
    %1609 = vmatprep.mubr.f32.mxu0 0.0
    %1610 = vmatmul.mubr.f32.gmra.mxu0 %v1541
    %v1611 = vpop.f32.mrf.mxu0
    %v1612 = vadd.f32 %v1045, %v1611
    %v1613 = vpop.f32.mrf.mxu0
    %1614 = vdwg.mxu0
    %v1615 = vsel %vm368, %v1612, -inf
    %1616 = vmax.xlane.f32.xlu0 %v1615
    %v1617 = vpop.xlane.xlu0 %1616
    %v1618 = vsub.f32 %v1612, %v1617
    %v1619 = vmul.f32 %v1618, 1.442695
    %v1620 = vpow.pop %v1619
    %v1621 = vsel %vm368, %v1620, 0.0
    %1622 = vadd.xlane.f32.xlu0 %v1621
    %v1623 = vpop.xlane.xlu0 %1622
    %v1624 = vrcp.pop %v1623
    %v1625 = vmul.f32 %v1620, %v1624
    %1626 = vrot.lane.b32.xlu0 %v359, 104
    %v1627 = vpop.permute.xlu0 %1626
    %v1630 = vsel %vm368, %v1625, 0
    %1632 = vmatprep.subr.mxu0 0.0
    %1633 = vmatpush1.msra.mxu0 0.0
    %1634 = vmatprep.subr.mxu0 0.0
    %1635 = vmatpush1.msra.mxu0 0.0
    %1636 = vmatprep.subr.mxu0 0.0
    %1637 = vmatpush1.msra.mxu0 0.0
    %1638 = vmatprep.subr.mxu0 0.0
    %1639 = vmatpush1.msra.mxu0 0.0
    %1640 = vmatprep.subr.mxu0 0.0
    %1641 = vmatpush1.msra.mxu0 0.0
    %1642 = vmatprep.subr.mxu0 0.0
    %1643 = vmatpush1.msra.mxu0 0.0
    %1644 = vmatprep.subr.mxu0 0.0
    %1645 = vmatpush1.msra.mxu0 0.0
    %1646 = vmatprep.subr.mxu0 0.0
    %1647 = vmatpush1.msra.mxu0 0.0
    %1648 = vmatprep.subr.mxu0 0.0
    %1649 = vmatpush1.msra.mxu0 0.0
    %1650 = vmatprep.subr.mxu0 0.0
    %1651 = vmatpush1.msra.mxu0 0.0
    %1652 = vmatprep.subr.mxu0 0.0
    %1653 = vmatpush1.msra.mxu0 0.0
    %1654 = vmatprep.subr.mxu0 0.0
    %1655 = vmatpush1.msra.mxu0 0.0
    %1656 = vmatprep.subr.mxu0 0.0
    %1657 = vmatpush1.msra.mxu0 0.0
    %1658 = vmatprep.subr.mxu0 0.0
    %1659 = vmatpush1.msra.mxu0 0.0
    %1660 = vmatprep.subr.mxu0 0.0
    %1661 = vmatpush1.msra.mxu0 0.0
    %1662 = vmatprep.subr.mxu0 0.0
    %1663 = vmatpush1.msra.mxu0 %v1627
    %1664 = vmatprep.subr.mxu0 0.0
    %1665 = vmatpush2.msra.mxu0 0.0
    %1666 = vmatprep.subr.mxu0 0.0
    %1667 = vmatpush2.msra.mxu0 0.0
    %1668 = vmatprep.subr.mxu0 0.0
    %1669 = vmatpush2.msra.mxu0 0.0
    %1670 = vmatprep.subr.mxu0 0.0
    %1671 = vmatpush2.msra.mxu0 0.0
    %1672 = vmatprep.subr.mxu0 0.0
    %1673 = vmatpush2.msra.mxu0 0.0
    %1674 = vmatprep.subr.mxu0 0.0
    %1675 = vmatpush2.msra.mxu0 0.0
    %1676 = vmatprep.subr.mxu0 0.0
    %1677 = vmatpush2.msra.mxu0 0.0
    %1678 = vmatprep.subr.mxu0 0.0
    %1679 = vmatpush2.msra.mxu0 0.0
    %1680 = vmatprep.subr.mxu0 0.0
    %1681 = vmatpush2.msra.mxu0 0.0
    %1682 = vmatprep.subr.mxu0 0.0
    %1683 = vmatpush2.msra.mxu0 0.0
    %1684 = vmatprep.subr.mxu0 0.0
    %1685 = vmatpush2.msra.mxu0 0.0
    %1686 = vmatprep.subr.mxu0 0.0
    %1687 = vmatpush2.msra.mxu0 0.0
    %1688 = vmatprep.subr.mxu0 0.0
    %1689 = vmatpush2.msra.mxu0 0.0
    %1690 = vmatprep.subr.mxu0 0.0
    %1691 = vmatpush2.msra.mxu0 0.0
    %1692 = vmatprep.subr.mxu0 0.0
    %1693 = vmatpush2.msra.mxu0 0.0
    %1694 = vmatprep.subr.mxu0 0.0
    %1695 = vmatpush2.msra.mxu0 0.0
    %1696 = vmatprep.mubr.f32.mxu0 0.0
    %1697 = vmatmul.mubr.f32.gmra.mxu0 %v1630
    %v1698 = vpop.f32.mrf.mxu0
    %v1699 = vadd.f32 0.0, %v1698
    %v1700 = vpop.f32.mrf.mxu0
    %1701 = vdwg.mxu0
    %1703 = vrot.lane.b32.xlu0 %v1369, 8
    %v1704 = vpop.permute.xlu0 %1703
    %1707 = vrot.lane.b32.xlu0 %v1534, 16
    %v1708 = vpop.permute.xlu0 %1707
    %1711 = vrot.lane.b32.xlu0 %v1699, 24
    %v1712 = vpop.permute.xlu0 %1711
    %v1714 = vsel %vm368, %v1203, %v1704
    %v1715 = vsel %vm1038, %v1714, %v1708
    %v1716 = vsel %vm1040, %v1715, %v1712
    %v1718 = vsel %vm118, %v1041, 0
    %v1721 = vsel %vm118, %v1716, 0
    %1723 = vmatprep.subr.mxu0 0.0
    %1724 = vmatpush1.msra.mxu0 0.0
    %1725 = vmatprep.subr.mxu0 0.0
    %1726 = vmatpush1.msra.mxu0 0.0
    %1727 = vmatprep.subr.mxu0 0.0
    %1728 = vmatpush1.msra.mxu0 0.0
    %1729 = vmatprep.subr.mxu0 0.0
    %1730 = vmatpush1.msra.mxu0 0.0
    %1731 = vmatprep.subr.mxu0 0.0
    %1732 = vmatpush1.msra.mxu0 0.0
    %1733 = vmatprep.subr.mxu0 0.0
    %1734 = vmatpush1.msra.mxu0 0.0
    %1735 = vmatprep.subr.mxu0 0.0
    %1736 = vmatpush1.msra.mxu0 0.0
    %1737 = vmatprep.subr.mxu0 0.0
    %1738 = vmatpush1.msra.mxu0 0.0
    %1739 = vmatprep.subr.mxu0 0.0
    %1740 = vmatpush1.msra.mxu0 0.0
    %1741 = vmatprep.subr.mxu0 0.0
    %1742 = vmatpush1.msra.mxu0 0.0
    %1743 = vmatprep.subr.mxu0 0.0
    %1744 = vmatpush1.msra.mxu0 0.0
    %1745 = vmatprep.subr.mxu0 0.0
    %1746 = vmatpush1.msra.mxu0 0.0
    %1747 = vmatprep.subr.mxu0 0.0
    %1748 = vmatpush1.msra.mxu0 %v117
    %1749 = vmatprep.subr.mxu0 0.0
    %1750 = vmatpush1.msra.mxu0 %v116
    %1751 = vmatprep.subr.mxu0 0.0
    %1752 = vmatpush1.msra.mxu0 %v115
    %1753 = vmatprep.subr.mxu0 0.0
    %1754 = vmatpush1.msra.mxu0 %v114
    %1755 = vmatprep.subr.mxu0 0.0
    %1756 = vmatpush2.msra.mxu0 0.0
    %1757 = vmatprep.subr.mxu0 0.0
    %1758 = vmatpush2.msra.mxu0 0.0
    %1759 = vmatprep.subr.mxu0 0.0
    %1760 = vmatpush2.msra.mxu0 0.0
    %1761 = vmatprep.subr.mxu0 0.0
    %1762 = vmatpush2.msra.mxu0 0.0
    %1763 = vmatprep.subr.mxu0 0.0
    %1764 = vmatpush2.msra.mxu0 0.0
    %1765 = vmatprep.subr.mxu0 0.0
    %1766 = vmatpush2.msra.mxu0 0.0
    %1767 = vmatprep.subr.mxu0 0.0
    %1768 = vmatpush2.msra.mxu0 0.0
    %1769 = vmatprep.subr.mxu0 0.0
    %1770 = vmatpush2.msra.mxu0 0.0
    %1771 = vmatprep.subr.mxu0 0.0
    %1772 = vmatpush2.msra.mxu0 0.0
    %1773 = vmatprep.subr.mxu0 0.0
    %1774 = vmatpush2.msra.mxu0 0.0
    %1775 = vmatprep.subr.mxu0 0.0
    %1776 = vmatpush2.msra.mxu0 0.0
    %1777 = vmatprep.subr.mxu0 0.0
    %1778 = vmatpush2.msra.mxu0 0.0
    %1779 = vmatprep.subr.mxu0 0.0
    %1780 = vmatpush2.msra.mxu0 0.0
    %1781 = vmatprep.subr.mxu0 0.0
    %1782 = vmatpush2.msra.mxu0 0.0
    %1783 = vmatprep.subr.mxu0 0.0
    %1784 = vmatpush2.msra.mxu0 0.0
    %1785 = vmatprep.subr.mxu0 0.0
    %1786 = vmatpush2.msra.mxu0 0.0
    %1787 = vmatprep.mubr.f32.mxu0 0.0
    %1788 = vmatmul.mubr.f32.gmra.mxu0 %v1718
    %v1789 = vpop.f32.mrf.mxu0
    %v1790 = vadd.f32 0.0, %v1789
    %v1791 = vpop.f32.mrf.mxu0
    %1792 = vmatprep.mubr.f32.mxu0 0.0
    %1793 = vmatmul.mubr.f32.gmra.mxu0 %v1721
    %v1794 = vpop.f32.mrf.mxu0
    %v1795 = vadd.f32 0.0, %v1794
    %v1796 = vpop.f32.mrf.mxu0
    %1797 = vdwg.mxu0
    %1798 = vst.msk [vmem:[#allocation13] sm:$0xff] %vm118, %v1790
    %1799 = vst.msk [vmem:[#allocation13 + $0x8] sm:$0xff] %vm118, %v1795
    // Predicated region
    $region42: #{tpu_custom_call.1} parent=1 // pred_check
      _
    $region43: #{tpu_custom_call.1} parent=1 // pred_check_branch
      %1801 = sbr.rel (0) target = $region45
    $region44: #{tpu_custom_call.1} parent=1 // pred_region
      %s1803 = ssub.s32 256, 256
      %1804 = vsyncadd [#allocation6], %s1803
      %s1805 = sshll.u32 [#allocation13], 4
      %s1806 = int_to_ptr.vmem [resolvable:$true] %s1805
      %1811 = dma.vmem_to_hbm [thread:$0]  %s1806, 256, %s6, [#allocation6], 128, 128, 8
    $region45: #{tpu_custom_call.1} parent=1 // pred_fallthru
      _
    // Predicated region
    $region46: #{tpu_custom_call.1} parent=1 // pred_check
      _
    $region47: #{tpu_custom_call.1} parent=1 // pred_check_branch
      %1813 = sbr.rel (0) target = $region49
    $region48: #{tpu_custom_call.1} parent=1 // pred_region
      %1814 = dma.done [#allocation6], 256
    $region49: #{tpu_custom_call.1} parent=1 // pred_fallthru
      _
    %1815 = vsyncpa [#allocation5], 1
    %1816 = vsyncpa [#allocation8], 1
    %1817 = vsyncpa [#allocation11], 1
    %1818 = vsyncpa [#allocation6], 1

</llo_original>
